<compile_context>
chip_gen: v5e
topology: v5e:2x2
jax: 0.10.0
libtpu: 0.0.40
codegen_flags: <defaults>
</compile_context>

<pallas_src>
import math

import jax
import jax.numpy as jnp
from jax.experimental import pallas as pl
from jax.experimental.pallas import tpu as pltpu

# ---------------------------------------------------------------------------
# Config (small shapes consistent with GRUNet's forward)
# ---------------------------------------------------------------------------
BATCH = 2
SEQ = 8
AUDIO_FEAT = 16            # audio_dim[2]
CLIN_FEAT = 8              # clinical_dim[1]
H = 32                     # RNN_params['hidden_size']
RNN_LAYERS = 2             # RNN_params['num_layers']
NN_HIDDEN = 32             # NN_params['hidden_size']
OUTPUT_DIM = 4
FUSION_IN = H + NN_HIDDEN          # bidirectional = False
FUSION_HIDDEN = FUSION_IN // 2     # fusion down_factor = 2
BN_EPS = 1e-5
LEAKY_SLOPE = 0.01                 # nn.LeakyReLU() default

BPAD = 8                   # batch rows padded to one f32 sublane tile
GW = 4 * H                 # 128 lanes: [r_pre | z_pre | n_x | n_h]
LANES = 128                # packed parameter buffer width


# ---------------------------------------------------------------------------
# Packed parameter buffer layout (bf16).  Row offsets are multiples of 16 so
# every slot view starts on a bf16 (16,128) tile boundary.
# ---------------------------------------------------------------------------
VEC_NAMES = ("gb0", "gb1", "nn_b1", "bn_scale", "bn_bias", "nn_b2",
             "f_b1", "f_b2", "f_b3")
VEC_INDEX = {n: i for i, n in enumerate(VEC_NAMES)}
VEC_WIDTH = {"gb0": GW, "gb1": GW, "nn_b1": NN_HIDDEN, "bn_scale": NN_HIDDEN,
             "bn_bias": NN_HIDDEN, "nn_b2": NN_HIDDEN, "f_b1": FUSION_HIDDEN,
             "f_b2": FUSION_HIDDEN, "f_b3": OUTPUT_DIM}

_PARAM_SLOTS = [
    ("w_ih0", AUDIO_FEAT, GW),               # layer-0 input weights [r|z|n|0]
    ("w_hh0", H, GW),                        # layer-0 hidden weights [r|z|0|n]
    ("w_cat1", 2 * H, GW),                   # layer-1 fused [w_ih1 ; w_hh1]
    ("nn_w1", CLIN_FEAT, NN_HIDDEN),
    ("nn_w2", NN_HIDDEN, NN_HIDDEN),
    ("f_w1_a", H, FUSION_HIDDEN),            # audio half of fusion W1
    ("f_w1_b", NN_HIDDEN, FUSION_HIDDEN),    # clinical half of fusion W1
    ("f_w2", FUSION_HIDDEN, FUSION_HIDDEN),
    ("f_w3", FUSION_HIDDEN, OUTPUT_DIM),
    ("vecs", len(VEC_NAMES), LANES),         # all bias/scale rows, one per row
]


def _ceil16(n):
    return (n + 15) // 16 * 16


PARAM_OFFSETS = {}
_row = 0
for _name, _r, _c in _PARAM_SLOTS:
    PARAM_OFFSETS[_name] = (_row, _r, _c)
    _row += _ceil16(_r)
PARAM_ROWS = _ceil16(_row)       # 304 rows * 128 lanes * 2 B ~= 76 KB


def _leaky_relu(x):
    return jnp.where(x > 0, x, LEAKY_SLOPE * x)


def _sigmoid(x):
    return 1.0 / (1.0 + jnp.exp(-x))


# ---------------------------------------------------------------------------
# Pallas kernel: full forward pass
# ---------------------------------------------------------------------------
def _grunet_kernel(x_ref, c_ref, p_ref, out_ref):
    f32, bf16 = jnp.float32, jnp.bfloat16

    def mat(name):
        row, r, cw = PARAM_OFFSETS[name]
        return p_ref[row:row + r, 0:cw]                     # bf16 view

    vec_base = PARAM_OFFSETS["vecs"][0]

    def vec(name):
        i = VEC_INDEX[name]
        return p_ref[vec_base + i:vec_base + i + 1, 0:VEC_WIDTH[name]].astype(f32)

    def gru_step(pre, h_prev):
        # pre: (BPAD, 4H) f32, lane slots [r_pre | z_pre | n_x | n_h]
        # (all biases already folded in).
        rz = _sigmoid(pre[:, 0:2 * H])
        r, z = rz[:, 0:H], rz[:, H:2 * H]
        n = jnp.tanh(pre[:, 2 * H:3 * H] + r * pre[:, 3 * H:4 * H])
        return (1.0 - z) * n + z * h_prev

    # ------------------ GRU (2 layers, wavefront-interleaved) --------------
    x = x_ref[...].astype(bf16)                             # (SEQ*BPAD, F) time-major
    w_ih0, w_hh0, w_cat1 = mat("w_ih0"), mat("w_hh0"), mat("w_cat1")

    # Layer-0 input projection batched over every timestep: ONE MXU op.
    gi0_all = (jnp.dot(x, w_ih0, preferred_element_type=f32)
               + vec("gb0"))                                # (SEQ*BPAD, 4H) f32
    gb1 = jnp.broadcast_to(vec("gb1"), (BPAD, GW))          # hoisted broadcast

    h0 = jnp.zeros((BPAD, H), f32)
    h1 = jnp.zeros((BPAD, H), f32)
    # Iteration t runs layer-0 step t and layer-1 step t-1; the two are data
    # independent so their recurrence chains overlap (critical path SEQ+1
    # dependent steps instead of 2*SEQ).
    for t in range(SEQ + 1):
        h0_prev = h0
        if t < SEQ:                                         # layer-0 step t
            gh0 = jnp.dot(h0_prev.astype(bf16), w_hh0,
                          preferred_element_type=f32)       # (BPAD, 4H)
            h0 = gru_step(gi0_all[t * BPAD:(t + 1) * BPAD, :] + gh0, h0_prev)
        if t >= 1:                                          # layer-1 step t-1
            # inter-layer GRU dropout -> identity at inference
            x1 = jnp.concatenate([h0_prev, h1], axis=1).astype(bf16)   # (BPAD, 2H)
            pre1 = jnp.dot(x1, w_cat1, preferred_element_type=f32) + gb1
            h1 = gru_step(pre1, h1)
    out_a = h1                                              # hidden[-1], (BPAD, H)

    # ------------------ clinical MLP (Linear -> LeakyReLU -> BN -> Linear) -
    cm = c_ref[...].astype(bf16)
    xm = jnp.dot(cm, mat("nn_w1"), preferred_element_type=f32) + vec("nn_b1")
    xm = _leaky_relu(xm)
    xm = xm * vec("bn_scale") + vec("bn_bias")
    # Dropout -> identity at inference
    out_c = (jnp.dot(xm.astype(bf16), mat("nn_w2"), preferred_element_type=f32)
             + vec("nn_b2"))

    # ------------------ fusion head (concat removed via split W1) ----------
    f = (jnp.dot(out_a.astype(bf16), mat("f_w1_a"), preferred_element_type=f32)
         + jnp.dot(out_c.astype(bf16), mat("f_w1_b"), preferred_element_type=f32)
         + vec("f_b1"))
    f = _leaky_relu(f)
    f = _leaky_relu(jnp.dot(f.astype(bf16), mat("f_w2"),
                            preferred_element_type=f32) + vec("f_b2"))
    # Dropout -> identity at inference
    out = jnp.dot(f.astype(bf16), mat("f_w3"),
                  preferred_element_type=f32) + vec("f_b3")
    out_ref[...] = out.astype(out_ref.dtype)


# ---------------------------------------------------------------------------
# Wrapper
# ---------------------------------------------------------------------------
@jax.jit
def grunet_forward(a, c, packed_params):
    B, T, F = a.shape
    # time-major, batch padded to 8 rows so each per-step slice is tile-aligned
    x0 = jnp.transpose(a, (1, 0, 2))                        # (T, B, F)
    x0 = jnp.pad(x0, ((0, 0), (0, BPAD - B), (0, 0)))       # (T, BPAD, F)
    x0 = x0.reshape(T * BPAD, F)
    cpad = jnp.pad(c, ((0, BPAD - B), (0, 0)))              # (BPAD, C)
    out = pl.pallas_call(
        _grunet_kernel,
        out_shape=jax.ShapeDtypeStruct((BPAD, OUTPUT_DIM), jnp.float32),
        in_specs=[pl.BlockSpec(memory_space=pltpu.MemorySpace.VMEM)] * 3,
        out_specs=pl.BlockSpec(memory_space=pltpu.MemorySpace.VMEM),
    )(x0, cpad, packed_params)
    return out[:B]


# ---------------------------------------------------------------------------
# Deterministic parameter construction (PyTorch-style uniform(-1/sqrt(fan), .))
# Weights are generated already transposed to (in, out) so y = x @ W + b.
# ---------------------------------------------------------------------------
def init_params(key):
    def uni(k, shape, bound):
        return jax.random.uniform(k, shape, jnp.float32, minval=-bound, maxval=bound)

    keys = iter(jax.random.split(key, 64))
    p = {}

    bound_g = 1.0 / math.sqrt(H)
    for layer in range(RNN_LAYERS):
        in_l = AUDIO_FEAT if layer == 0 else H
        p[f"gru{layer}_w_ih"] = uni(next(keys), (in_l, 3 * H), bound_g)   # [r|z|n]
        p[f"gru{layer}_w_hh"] = uni(next(keys), (H, 3 * H), bound_g)
        p[f"gru{layer}_b_ih"] = uni(next(keys), (3 * H,), bound_g)
        p[f"gru{layer}_b_hh"] = uni(next(keys), (3 * H,), bound_g)

    b1 = 1.0 / math.sqrt(CLIN_FEAT)
    p["nn_w1"] = uni(next(keys), (CLIN_FEAT, NN_HIDDEN), b1)
    p["nn_b1"] = uni(next(keys), (NN_HIDDEN,), b1)
    # BatchNorm1d eval-mode stats at init: gamma=1, beta=0, mean=0, var=1
    p["bn_gamma"] = jnp.ones((NN_HIDDEN,), jnp.float32)
    p["bn_beta"] = jnp.zeros((NN_HIDDEN,), jnp.float32)
    p["bn_mean"] = jnp.zeros((NN_HIDDEN,), jnp.float32)
    p["bn_var"] = jnp.ones((NN_HIDDEN,), jnp.float32)
    b2 = 1.0 / math.sqrt(NN_HIDDEN)
    p["nn_w2"] = uni(next(keys), (NN_HIDDEN, NN_HIDDEN), b2)
    p["nn_b2"] = uni(next(keys), (NN_HIDDEN,), b2)

    bf1 = 1.0 / math.sqrt(FUSION_IN)
    bf2 = 1.0 / math.sqrt(FUSION_HIDDEN)
    p["f_w1"] = uni(next(keys), (FUSION_IN, FUSION_HIDDEN), bf1)
    p["f_b1"] = uni(next(keys), (FUSION_HIDDEN,), bf1)
    p["f_w2"] = uni(next(keys), (FUSION_HIDDEN, FUSION_HIDDEN), bf2)
    p["f_b2"] = uni(next(keys), (FUSION_HIDDEN,), bf2)
    p["f_w3"] = uni(next(keys), (FUSION_HIDDEN, OUTPUT_DIM), bf2)
    p["f_b3"] = uni(next(keys), (OUTPUT_DIM,), bf2)
    return p


def _split_gates(w):
    # (rows, 3H) gate-major [r|z|n] -> three H-wide blocks
    return w[:, 0:H], w[:, H:2 * H], w[:, 2 * H:3 * H]


def pack_params(p):
    """Densely pack all parameters into one bf16 (PARAM_ROWS, 128) buffer.

    Lane layout of every GRU matmul result: [r_pre | z_pre | n_x | n_h].
    """
    def zrows(rows):
        return jnp.zeros((rows, H), jnp.float32)

    slots = {}

    # ---- GRU layer 0 -------------------------------------------------------
    wir, wiz, win = _split_gates(p["gru0_w_ih"])            # (16, H) each
    whr, whz, whn = _split_gates(p["gru0_w_hh"])            # (32, H) each
    slots["w_ih0"] = jnp.concatenate([wir, wiz, win, zrows(AUDIO_FEAT)], axis=1)
    slots["w_hh0"] = jnp.concatenate([whr, whz, zrows(H), whn], axis=1)

    # ---- GRU layer 1: fused [w_ih1 ; w_hh1] for the wavefront step ---------
    wir, wiz, win = _split_gates(p["gru1_w_ih"])            # (32, H)
    whr, whz, whn = _split_gates(p["gru1_w_hh"])            # (32, H)
    top = jnp.concatenate([wir, wiz, win, zrows(H)], axis=1)  # acts on h0 (input)
    bot = jnp.concatenate([whr, whz, zrows(H), whn], axis=1)  # acts on h1 (hidden)
    slots["w_cat1"] = jnp.concatenate([top, bot], axis=0)     # (64, 128)

    def gate_bias(b_ih, b_hh):
        # [b_ir+b_hr | b_iz+b_hz | b_in | b_hn]  (128,)
        return jnp.concatenate([b_ih[0:H] + b_hh[0:H],
                                b_ih[H:2 * H] + b_hh[H:2 * H],
                                b_ih[2 * H:3 * H],
                                b_hh[2 * H:3 * H]])

    bn_scale = p["bn_gamma"] / jnp.sqrt(p["bn_var"] + BN_EPS)
    bn_bias = p["bn_beta"] - p["bn_mean"] * bn_scale

    vec_rows = {
        "gb0": gate_bias(p["gru0_b_ih"], p["gru0_b_hh"]),
        "gb1": gate_bias(p["gru1_b_ih"], p["gru1_b_hh"]),
        "nn_b1": p["nn_b1"],
        "bn_scale": bn_scale,
        "bn_bias": bn_bias,
        "nn_b2": p["nn_b2"],
        "f_b1": p["f_b1"],
        "f_b2": p["f_b2"],
        "f_b3": p["f_b3"],
    }
    vecs = jnp.zeros((len(VEC_NAMES), LANES), jnp.float32)
    for name, i in VEC_INDEX.items():
        v = vec_rows[name]
        assert v.shape == (VEC_WIDTH[name],), (name, v.shape)
        vecs = vecs.at[i, :v.shape[0]].set(v)
    slots["vecs"] = vecs

    slots["nn_w1"] = p["nn_w1"]
    slots["nn_w2"] = p["nn_w2"]
    slots["f_w1_a"] = p["f_w1"][:H]
    slots["f_w1_b"] = p["f_w1"][H:]
    slots["f_w2"] = p["f_w2"]
    slots["f_w3"] = p["f_w3"]

    buf = jnp.zeros((PARAM_ROWS, LANES), jnp.float32)
    for name, (row, r, cw) in PARAM_OFFSETS.items():
        val = slots[name]
        assert val.shape == (r, cw), (name, val.shape, (r, cw))
        buf = buf.at[row:row + r, :cw].set(val)
    return buf.astype(jnp.bfloat16)


# ---------------------------------------------------------------------------
# Pure-JAX reference (same bf16 operand rounding as the kernel)
# ---------------------------------------------------------------------------
def grunet_reference(a, c, p):
    f32, bf16 = jnp.float32, jnp.bfloat16
    q = lambda v: v.astype(bf16).astype(f32)       # emulate bf16 param storage
    bd = lambda x, w: jnp.dot(x.astype(bf16), w.astype(bf16),
                              preferred_element_type=f32)

    B, T, _ = a.shape
    inp = a.astype(f32)
    h = None
    for layer in range(RNN_LAYERS):
        w_ih, w_hh = p[f"gru{layer}_w_ih"], p[f"gru{layer}_w_hh"]
        b_ih, b_hh = q(p[f"gru{layer}_b_ih"]), q(p[f"gru{layer}_b_hh"])
        h = jnp.zeros((B, H), f32)
        outs = []
        for t in range(T):
            gi = bd(inp[:, t, :], w_ih) + b_ih
            gh = bd(h, w_hh) + b_hh
            r = _sigmoid(gi[:, 0:H] + gh[:, 0:H])
            z = _sigmoid(gi[:, H:2 * H] + gh[:, H:2 * H])
            n = jnp.tanh(gi[:, 2 * H:] + r * gh[:, 2 * H:])
            h = (1.0 - z) * n + z * h
            outs.append(h)
        inp = jnp.stack(outs, axis=1)
    out_a = h

    xm = bd(c, p["nn_w1"]) + q(p["nn_b1"])
    xm = _leaky_relu(xm)
    scale = p["bn_gamma"] / jnp.sqrt(p["bn_var"] + BN_EPS)
    bias = p["bn_beta"] - p["bn_mean"] * scale
    xm = xm * q(scale) + q(bias)
    out_c = bd(xm, p["nn_w2"]) + q(p["nn_b2"])

    fx = jnp.concatenate([out_a, out_c], axis=1)
    f = _leaky_relu(bd(fx, p["f_w1"]) + q(p["f_b1"]))
    f = _leaky_relu(bd(f, p["f_w2"]) + q(p["f_b2"]))
    return bd(f, p["f_w3"]) + q(p["f_b3"])


if __name__ == "__main__":
    key = jax.random.PRNGKey(0)
    k_a, k_c, k_p = jax.random.split(key, 3)
    a = jax.random.normal(k_a, (BATCH, SEQ, AUDIO_FEAT), jnp.float32)
    c = jax.random.normal(k_c, (BATCH, CLIN_FEAT), jnp.float32)
    params = init_params(k_p)
    packed = pack_params(params)

    out = jax.block_until_ready(grunet_forward(a, c, packed))

    assert out.shape == (BATCH, OUTPUT_DIM)
    assert bool(jnp.all(jnp.isfinite(out)))

    ref = grunet_reference(a, c, params)
    err = float(jnp.max(jnp.abs(out - ref)))
    assert err < 3e-2, f"max abs error vs reference: {err}"
    print("KERNEL_OK")
</pallas_src>

<mosaic_0001>
module attributes {stable_mosaic.version = 11 : i64} {
  func.func @_grunet_kernel(%arg0: memref<64x16xf32, #tpu.memory_space<vmem>>, %arg1: memref<8x8xf32, #tpu.memory_space<vmem>>, %arg2: memref<304x128xbf16, #tpu.memory_space<vmem>>, %arg3: memref<8x4xf32, #tpu.memory_space<vmem>>) attributes {dimension_semantics = [], scalar_prefetch = 0 : i64, scratch_operands = 0 : i64, tpu.core_type = #tpu.core_type<tc>} {
    %c0 = arith.constant 0 : index
    %c0_0 = arith.constant 0 : index
    %0 = vector.load %arg0[%c0, %c0_0] : memref<64x16xf32, #tpu.memory_space<vmem>>, vector<64x16xf32>
    %1 = arith.truncf %0 : vector<64x16xf32> to vector<64x16xbf16>
    %c0_1 = arith.constant 0 : index
    %c0_2 = arith.constant 0 : index
    %2 = vector.load %arg2[%c0_1, %c0_2] : memref<304x128xbf16, #tpu.memory_space<vmem>>, vector<16x128xbf16>
    %c16 = arith.constant 16 : index
    %c0_3 = arith.constant 0 : index
    %3 = vector.load %arg2[%c16, %c0_3] : memref<304x128xbf16, #tpu.memory_space<vmem>>, vector<32x128xbf16>
    %c48 = arith.constant 48 : index
    %c0_4 = arith.constant 0 : index
    %4 = vector.load %arg2[%c48, %c0_4] : memref<304x128xbf16, #tpu.memory_space<vmem>>, vector<64x128xbf16>
    %cst = arith.constant dense<0.000000e+00> : vector<64x128xf32>
    %5 = tpu.matmul %1, %2, %cst {dimension_numbers = #tpu.dot_dimension_numbers<[1], [0], [0], [1], [0, 0, 1, 1], [], []>} : vector<64x16xbf16>, vector<16x128xbf16>, vector<64x128xf32> -> vector<64x128xf32>
    %c288 = arith.constant 288 : index
    %c0_5 = arith.constant 0 : index
    %6 = vector.load %arg2[%c288, %c0_5] : memref<304x128xbf16, #tpu.memory_space<vmem>>, vector<1x128xbf16>
    %7 = arith.extf %6 : vector<1x128xbf16> to vector<1x128xf32>
    %8 = vector.broadcast %7 : vector<1x128xf32> to vector<64x128xf32>
    %9 = arith.addf %5, %8 : vector<64x128xf32>
    %c289 = arith.constant 289 : index
    %c0_6 = arith.constant 0 : index
    %10 = vector.load %arg2[%c289, %c0_6] : memref<304x128xbf16, #tpu.memory_space<vmem>>, vector<1x128xbf16>
    %11 = arith.extf %10 : vector<1x128xbf16> to vector<1x128xf32>
    %12 = vector.shape_cast %11 : vector<1x128xf32> to vector<1x128xf32>
    %13 = vector.broadcast %12 : vector<1x128xf32> to vector<8x128xf32>
    %cst_7 = arith.constant 0.000000e+00 : f32
    %14 = vector.broadcast %cst_7 : f32 to vector<8x32xf32>
    %cst_8 = arith.constant 0.000000e+00 : f32
    %15 = vector.broadcast %cst_8 : f32 to vector<8x32xf32>
    %16 = arith.truncf %14 : vector<8x32xf32> to vector<8x32xbf16>
    %cst_9 = arith.constant dense<0.000000e+00> : vector<8x128xf32>
    %17 = tpu.matmul %16, %3, %cst_9 {dimension_numbers = #tpu.dot_dimension_numbers<[1], [0], [0], [1], [0, 0, 1, 1], [], []>} : vector<8x32xbf16>, vector<32x128xbf16>, vector<8x128xf32> -> vector<8x128xf32>
    %18 = vector.extract_strided_slice %9 {offsets = [0, 0], sizes = [8, 128], strides = [1, 1]} : vector<64x128xf32> to vector<8x128xf32>
    %19 = arith.addf %18, %17 : vector<8x128xf32>
    %20 = vector.extract_strided_slice %19 {offsets = [0, 0], sizes = [8, 64], strides = [1, 1]} : vector<8x128xf32> to vector<8x64xf32>
    %cst_10 = arith.constant 0.000000e+00 : f32
    %21 = vector.broadcast %cst_10 : f32 to vector<8x64xf32>
    %22 = arith.subf %21, %20 : vector<8x64xf32>
    %23 = math.exp %22 : vector<8x64xf32>
    %cst_11 = arith.constant 1.000000e+00 : f32
    %24 = vector.broadcast %cst_11 : f32 to vector<8x64xf32>
    %25 = arith.addf %24, %23 : vector<8x64xf32>
    %cst_12 = arith.constant 1.000000e+00 : f32
    %26 = vector.broadcast %cst_12 : f32 to vector<8x64xf32>
    %27 = arith.divf %26, %25 : vector<8x64xf32>
    %28 = vector.extract_strided_slice %27 {offsets = [0, 0], sizes = [8, 32], strides = [1, 1]} : vector<8x64xf32> to vector<8x32xf32>
    %29 = vector.extract_strided_slice %27 {offsets = [0, 32], sizes = [8, 32], strides = [1, 1]} : vector<8x64xf32> to vector<8x32xf32>
    %30 = vector.extract_strided_slice %19 {offsets = [0, 64], sizes = [8, 32], strides = [1, 1]} : vector<8x128xf32> to vector<8x32xf32>
    %31 = vector.extract_strided_slice %19 {offsets = [0, 96], sizes = [8, 32], strides = [1, 1]} : vector<8x128xf32> to vector<8x32xf32>
    %32 = arith.mulf %28, %31 : vector<8x32xf32>
    %33 = arith.addf %30, %32 : vector<8x32xf32>
    %34 = math.tanh %33 : vector<8x32xf32>
    %cst_13 = arith.constant 1.000000e+00 : f32
    %35 = vector.broadcast %cst_13 : f32 to vector<8x32xf32>
    %36 = arith.subf %35, %29 : vector<8x32xf32>
    %37 = arith.mulf %36, %34 : vector<8x32xf32>
    %38 = arith.mulf %29, %14 : vector<8x32xf32>
    %39 = arith.addf %37, %38 : vector<8x32xf32>
    %40 = arith.truncf %39 : vector<8x32xf32> to vector<8x32xbf16>
    %cst_14 = arith.constant dense<0.000000e+00> : vector<8x128xf32>
    %41 = tpu.matmul %40, %3, %cst_14 {dimension_numbers = #tpu.dot_dimension_numbers<[1], [0], [0], [1], [0, 0, 1, 1], [], []>} : vector<8x32xbf16>, vector<32x128xbf16>, vector<8x128xf32> -> vector<8x128xf32>
    %42 = vector.extract_strided_slice %9 {offsets = [8, 0], sizes = [8, 128], strides = [1, 1]} : vector<64x128xf32> to vector<8x128xf32>
    %43 = arith.addf %42, %41 : vector<8x128xf32>
    %44 = vector.extract_strided_slice %43 {offsets = [0, 0], sizes = [8, 64], strides = [1, 1]} : vector<8x128xf32> to vector<8x64xf32>
    %cst_15 = arith.constant 0.000000e+00 : f32
    %45 = vector.broadcast %cst_15 : f32 to vector<8x64xf32>
    %46 = arith.subf %45, %44 : vector<8x64xf32>
    %47 = math.exp %46 : vector<8x64xf32>
    %cst_16 = arith.constant 1.000000e+00 : f32
    %48 = vector.broadcast %cst_16 : f32 to vector<8x64xf32>
    %49 = arith.addf %48, %47 : vector<8x64xf32>
    %cst_17 = arith.constant 1.000000e+00 : f32
    %50 = vector.broadcast %cst_17 : f32 to vector<8x64xf32>
    %51 = arith.divf %50, %49 : vector<8x64xf32>
    %52 = vector.extract_strided_slice %51 {offsets = [0, 0], sizes = [8, 32], strides = [1, 1]} : vector<8x64xf32> to vector<8x32xf32>
    %53 = vector.extract_strided_slice %51 {offsets = [0, 32], sizes = [8, 32], strides = [1, 1]} : vector<8x64xf32> to vector<8x32xf32>
    %54 = vector.extract_strided_slice %43 {offsets = [0, 64], sizes = [8, 32], strides = [1, 1]} : vector<8x128xf32> to vector<8x32xf32>
    %55 = vector.extract_strided_slice %43 {offsets = [0, 96], sizes = [8, 32], strides = [1, 1]} : vector<8x128xf32> to vector<8x32xf32>
    %56 = arith.mulf %52, %55 : vector<8x32xf32>
    %57 = arith.addf %54, %56 : vector<8x32xf32>
    %58 = math.tanh %57 : vector<8x32xf32>
    %cst_18 = arith.constant 1.000000e+00 : f32
    %59 = vector.broadcast %cst_18 : f32 to vector<8x32xf32>
    %60 = arith.subf %59, %53 : vector<8x32xf32>
    %61 = arith.mulf %60, %58 : vector<8x32xf32>
    %62 = arith.mulf %53, %39 : vector<8x32xf32>
    %63 = arith.addf %61, %62 : vector<8x32xf32>
    %64 = tpu.concatenate %39, %15 in 1 : vector<8x32xf32>, vector<8x32xf32> -> vector<8x64xf32>
    %65 = arith.truncf %64 : vector<8x64xf32> to vector<8x64xbf16>
    %cst_19 = arith.constant dense<0.000000e+00> : vector<8x128xf32>
    %66 = tpu.matmul %65, %4, %cst_19 {dimension_numbers = #tpu.dot_dimension_numbers<[1], [0], [0], [1], [0, 0, 1, 1], [], []>} : vector<8x64xbf16>, vector<64x128xbf16>, vector<8x128xf32> -> vector<8x128xf32>
    %67 = arith.addf %66, %13 : vector<8x128xf32>
    %68 = vector.extract_strided_slice %67 {offsets = [0, 0], sizes = [8, 64], strides = [1, 1]} : vector<8x128xf32> to vector<8x64xf32>
    %cst_20 = arith.constant 0.000000e+00 : f32
    %69 = vector.broadcast %cst_20 : f32 to vector<8x64xf32>
    %70 = arith.subf %69, %68 : vector<8x64xf32>
    %71 = math.exp %70 : vector<8x64xf32>
    %cst_21 = arith.constant 1.000000e+00 : f32
    %72 = vector.broadcast %cst_21 : f32 to vector<8x64xf32>
    %73 = arith.addf %72, %71 : vector<8x64xf32>
    %cst_22 = arith.constant 1.000000e+00 : f32
    %74 = vector.broadcast %cst_22 : f32 to vector<8x64xf32>
    %75 = arith.divf %74, %73 : vector<8x64xf32>
    %76 = vector.extract_strided_slice %75 {offsets = [0, 0], sizes = [8, 32], strides = [1, 1]} : vector<8x64xf32> to vector<8x32xf32>
    %77 = vector.extract_strided_slice %75 {offsets = [0, 32], sizes = [8, 32], strides = [1, 1]} : vector<8x64xf32> to vector<8x32xf32>
    %78 = vector.extract_strided_slice %67 {offsets = [0, 64], sizes = [8, 32], strides = [1, 1]} : vector<8x128xf32> to vector<8x32xf32>
    %79 = vector.extract_strided_slice %67 {offsets = [0, 96], sizes = [8, 32], strides = [1, 1]} : vector<8x128xf32> to vector<8x32xf32>
    %80 = arith.mulf %76, %79 : vector<8x32xf32>
    %81 = arith.addf %78, %80 : vector<8x32xf32>
    %82 = math.tanh %81 : vector<8x32xf32>
    %cst_23 = arith.constant 1.000000e+00 : f32
    %83 = vector.broadcast %cst_23 : f32 to vector<8x32xf32>
    %84 = arith.subf %83, %77 : vector<8x32xf32>
    %85 = arith.mulf %84, %82 : vector<8x32xf32>
    %86 = arith.mulf %77, %15 : vector<8x32xf32>
    %87 = arith.addf %85, %86 : vector<8x32xf32>
    %88 = arith.truncf %63 : vector<8x32xf32> to vector<8x32xbf16>
    %cst_24 = arith.constant dense<0.000000e+00> : vector<8x128xf32>
    %89 = tpu.matmul %88, %3, %cst_24 {dimension_numbers = #tpu.dot_dimension_numbers<[1], [0], [0], [1], [0, 0, 1, 1], [], []>} : vector<8x32xbf16>, vector<32x128xbf16>, vector<8x128xf32> -> vector<8x128xf32>
    %90 = vector.extract_strided_slice %9 {offsets = [16, 0], sizes = [8, 128], strides = [1, 1]} : vector<64x128xf32> to vector<8x128xf32>
    %91 = arith.addf %90, %89 : vector<8x128xf32>
    %92 = vector.extract_strided_slice %91 {offsets = [0, 0], sizes = [8, 64], strides = [1, 1]} : vector<8x128xf32> to vector<8x64xf32>
    %cst_25 = arith.constant 0.000000e+00 : f32
    %93 = vector.broadcast %cst_25 : f32 to vector<8x64xf32>
    %94 = arith.subf %93, %92 : vector<8x64xf32>
    %95 = math.exp %94 : vector<8x64xf32>
    %cst_26 = arith.constant 1.000000e+00 : f32
    %96 = vector.broadcast %cst_26 : f32 to vector<8x64xf32>
    %97 = arith.addf %96, %95 : vector<8x64xf32>
    %cst_27 = arith.constant 1.000000e+00 : f32
    %98 = vector.broadcast %cst_27 : f32 to vector<8x64xf32>
    %99 = arith.divf %98, %97 : vector<8x64xf32>
    %100 = vector.extract_strided_slice %99 {offsets = [0, 0], sizes = [8, 32], strides = [1, 1]} : vector<8x64xf32> to vector<8x32xf32>
    %101 = vector.extract_strided_slice %99 {offsets = [0, 32], sizes = [8, 32], strides = [1, 1]} : vector<8x64xf32> to vector<8x32xf32>
    %102 = vector.extract_strided_slice %91 {offsets = [0, 64], sizes = [8, 32], strides = [1, 1]} : vector<8x128xf32> to vector<8x32xf32>
    %103 = vector.extract_strided_slice %91 {offsets = [0, 96], sizes = [8, 32], strides = [1, 1]} : vector<8x128xf32> to vector<8x32xf32>
    %104 = arith.mulf %100, %103 : vector<8x32xf32>
    %105 = arith.addf %102, %104 : vector<8x32xf32>
    %106 = math.tanh %105 : vector<8x32xf32>
    %cst_28 = arith.constant 1.000000e+00 : f32
    %107 = vector.broadcast %cst_28 : f32 to vector<8x32xf32>
    %108 = arith.subf %107, %101 : vector<8x32xf32>
    %109 = arith.mulf %108, %106 : vector<8x32xf32>
    %110 = arith.mulf %101, %63 : vector<8x32xf32>
    %111 = arith.addf %109, %110 : vector<8x32xf32>
    %112 = tpu.concatenate %63, %87 in 1 : vector<8x32xf32>, vector<8x32xf32> -> vector<8x64xf32>
    %113 = arith.truncf %112 : vector<8x64xf32> to vector<8x64xbf16>
    %cst_29 = arith.constant dense<0.000000e+00> : vector<8x128xf32>
    %114 = tpu.matmul %113, %4, %cst_29 {dimension_numbers = #tpu.dot_dimension_numbers<[1], [0], [0], [1], [0, 0, 1, 1], [], []>} : vector<8x64xbf16>, vector<64x128xbf16>, vector<8x128xf32> -> vector<8x128xf32>
    %115 = arith.addf %114, %13 : vector<8x128xf32>
    %116 = vector.extract_strided_slice %115 {offsets = [0, 0], sizes = [8, 64], strides = [1, 1]} : vector<8x128xf32> to vector<8x64xf32>
    %cst_30 = arith.constant 0.000000e+00 : f32
    %117 = vector.broadcast %cst_30 : f32 to vector<8x64xf32>
    %118 = arith.subf %117, %116 : vector<8x64xf32>
    %119 = math.exp %118 : vector<8x64xf32>
    %cst_31 = arith.constant 1.000000e+00 : f32
    %120 = vector.broadcast %cst_31 : f32 to vector<8x64xf32>
    %121 = arith.addf %120, %119 : vector<8x64xf32>
    %cst_32 = arith.constant 1.000000e+00 : f32
    %122 = vector.broadcast %cst_32 : f32 to vector<8x64xf32>
    %123 = arith.divf %122, %121 : vector<8x64xf32>
    %124 = vector.extract_strided_slice %123 {offsets = [0, 0], sizes = [8, 32], strides = [1, 1]} : vector<8x64xf32> to vector<8x32xf32>
    %125 = vector.extract_strided_slice %123 {offsets = [0, 32], sizes = [8, 32], strides = [1, 1]} : vector<8x64xf32> to vector<8x32xf32>
    %126 = vector.extract_strided_slice %115 {offsets = [0, 64], sizes = [8, 32], strides = [1, 1]} : vector<8x128xf32> to vector<8x32xf32>
    %127 = vector.extract_strided_slice %115 {offsets = [0, 96], sizes = [8, 32], strides = [1, 1]} : vector<8x128xf32> to vector<8x32xf32>
    %128 = arith.mulf %124, %127 : vector<8x32xf32>
    %129 = arith.addf %126, %128 : vector<8x32xf32>
    %130 = math.tanh %129 : vector<8x32xf32>
    %cst_33 = arith.constant 1.000000e+00 : f32
    %131 = vector.broadcast %cst_33 : f32 to vector<8x32xf32>
    %132 = arith.subf %131, %125 : vector<8x32xf32>
    %133 = arith.mulf %132, %130 : vector<8x32xf32>
    %134 = arith.mulf %125, %87 : vector<8x32xf32>
    %135 = arith.addf %133, %134 : vector<8x32xf32>
    %136 = arith.truncf %111 : vector<8x32xf32> to vector<8x32xbf16>
    %cst_34 = arith.constant dense<0.000000e+00> : vector<8x128xf32>
    %137 = tpu.matmul %136, %3, %cst_34 {dimension_numbers = #tpu.dot_dimension_numbers<[1], [0], [0], [1], [0, 0, 1, 1], [], []>} : vector<8x32xbf16>, vector<32x128xbf16>, vector<8x128xf32> -> vector<8x128xf32>
    %138 = vector.extract_strided_slice %9 {offsets = [24, 0], sizes = [8, 128], strides = [1, 1]} : vector<64x128xf32> to vector<8x128xf32>
    %139 = arith.addf %138, %137 : vector<8x128xf32>
    %140 = vector.extract_strided_slice %139 {offsets = [0, 0], sizes = [8, 64], strides = [1, 1]} : vector<8x128xf32> to vector<8x64xf32>
    %cst_35 = arith.constant 0.000000e+00 : f32
    %141 = vector.broadcast %cst_35 : f32 to vector<8x64xf32>
    %142 = arith.subf %141, %140 : vector<8x64xf32>
    %143 = math.exp %142 : vector<8x64xf32>
    %cst_36 = arith.constant 1.000000e+00 : f32
    %144 = vector.broadcast %cst_36 : f32 to vector<8x64xf32>
    %145 = arith.addf %144, %143 : vector<8x64xf32>
    %cst_37 = arith.constant 1.000000e+00 : f32
    %146 = vector.broadcast %cst_37 : f32 to vector<8x64xf32>
    %147 = arith.divf %146, %145 : vector<8x64xf32>
    %148 = vector.extract_strided_slice %147 {offsets = [0, 0], sizes = [8, 32], strides = [1, 1]} : vector<8x64xf32> to vector<8x32xf32>
    %149 = vector.extract_strided_slice %147 {offsets = [0, 32], sizes = [8, 32], strides = [1, 1]} : vector<8x64xf32> to vector<8x32xf32>
    %150 = vector.extract_strided_slice %139 {offsets = [0, 64], sizes = [8, 32], strides = [1, 1]} : vector<8x128xf32> to vector<8x32xf32>
    %151 = vector.extract_strided_slice %139 {offsets = [0, 96], sizes = [8, 32], strides = [1, 1]} : vector<8x128xf32> to vector<8x32xf32>
    %152 = arith.mulf %148, %151 : vector<8x32xf32>
    %153 = arith.addf %150, %152 : vector<8x32xf32>
    %154 = math.tanh %153 : vector<8x32xf32>
    %cst_38 = arith.constant 1.000000e+00 : f32
    %155 = vector.broadcast %cst_38 : f32 to vector<8x32xf32>
    %156 = arith.subf %155, %149 : vector<8x32xf32>
    %157 = arith.mulf %156, %154 : vector<8x32xf32>
    %158 = arith.mulf %149, %111 : vector<8x32xf32>
    %159 = arith.addf %157, %158 : vector<8x32xf32>
    %160 = tpu.concatenate %111, %135 in 1 : vector<8x32xf32>, vector<8x32xf32> -> vector<8x64xf32>
    %161 = arith.truncf %160 : vector<8x64xf32> to vector<8x64xbf16>
    %cst_39 = arith.constant dense<0.000000e+00> : vector<8x128xf32>
    %162 = tpu.matmul %161, %4, %cst_39 {dimension_numbers = #tpu.dot_dimension_numbers<[1], [0], [0], [1], [0, 0, 1, 1], [], []>} : vector<8x64xbf16>, vector<64x128xbf16>, vector<8x128xf32> -> vector<8x128xf32>
    %163 = arith.addf %162, %13 : vector<8x128xf32>
    %164 = vector.extract_strided_slice %163 {offsets = [0, 0], sizes = [8, 64], strides = [1, 1]} : vector<8x128xf32> to vector<8x64xf32>
    %cst_40 = arith.constant 0.000000e+00 : f32
    %165 = vector.broadcast %cst_40 : f32 to vector<8x64xf32>
    %166 = arith.subf %165, %164 : vector<8x64xf32>
    %167 = math.exp %166 : vector<8x64xf32>
    %cst_41 = arith.constant 1.000000e+00 : f32
    %168 = vector.broadcast %cst_41 : f32 to vector<8x64xf32>
    %169 = arith.addf %168, %167 : vector<8x64xf32>
    %cst_42 = arith.constant 1.000000e+00 : f32
    %170 = vector.broadcast %cst_42 : f32 to vector<8x64xf32>
    %171 = arith.divf %170, %169 : vector<8x64xf32>
    %172 = vector.extract_strided_slice %171 {offsets = [0, 0], sizes = [8, 32], strides = [1, 1]} : vector<8x64xf32> to vector<8x32xf32>
    %173 = vector.extract_strided_slice %171 {offsets = [0, 32], sizes = [8, 32], strides = [1, 1]} : vector<8x64xf32> to vector<8x32xf32>
    %174 = vector.extract_strided_slice %163 {offsets = [0, 64], sizes = [8, 32], strides = [1, 1]} : vector<8x128xf32> to vector<8x32xf32>
    %175 = vector.extract_strided_slice %163 {offsets = [0, 96], sizes = [8, 32], strides = [1, 1]} : vector<8x128xf32> to vector<8x32xf32>
    %176 = arith.mulf %172, %175 : vector<8x32xf32>
    %177 = arith.addf %174, %176 : vector<8x32xf32>
    %178 = math.tanh %177 : vector<8x32xf32>
    %cst_43 = arith.constant 1.000000e+00 : f32
    %179 = vector.broadcast %cst_43 : f32 to vector<8x32xf32>
    %180 = arith.subf %179, %173 : vector<8x32xf32>
    %181 = arith.mulf %180, %178 : vector<8x32xf32>
    %182 = arith.mulf %173, %135 : vector<8x32xf32>
    %183 = arith.addf %181, %182 : vector<8x32xf32>
    %184 = arith.truncf %159 : vector<8x32xf32> to vector<8x32xbf16>
    %cst_44 = arith.constant dense<0.000000e+00> : vector<8x128xf32>
    %185 = tpu.matmul %184, %3, %cst_44 {dimension_numbers = #tpu.dot_dimension_numbers<[1], [0], [0], [1], [0, 0, 1, 1], [], []>} : vector<8x32xbf16>, vector<32x128xbf16>, vector<8x128xf32> -> vector<8x128xf32>
    %186 = vector.extract_strided_slice %9 {offsets = [32, 0], sizes = [8, 128], strides = [1, 1]} : vector<64x128xf32> to vector<8x128xf32>
    %187 = arith.addf %186, %185 : vector<8x128xf32>
    %188 = vector.extract_strided_slice %187 {offsets = [0, 0], sizes = [8, 64], strides = [1, 1]} : vector<8x128xf32> to vector<8x64xf32>
    %cst_45 = arith.constant 0.000000e+00 : f32
    %189 = vector.broadcast %cst_45 : f32 to vector<8x64xf32>
    %190 = arith.subf %189, %188 : vector<8x64xf32>
    %191 = math.exp %190 : vector<8x64xf32>
    %cst_46 = arith.constant 1.000000e+00 : f32
    %192 = vector.broadcast %cst_46 : f32 to vector<8x64xf32>
    %193 = arith.addf %192, %191 : vector<8x64xf32>
    %cst_47 = arith.constant 1.000000e+00 : f32
    %194 = vector.broadcast %cst_47 : f32 to vector<8x64xf32>
    %195 = arith.divf %194, %193 : vector<8x64xf32>
    %196 = vector.extract_strided_slice %195 {offsets = [0, 0], sizes = [8, 32], strides = [1, 1]} : vector<8x64xf32> to vector<8x32xf32>
    %197 = vector.extract_strided_slice %195 {offsets = [0, 32], sizes = [8, 32], strides = [1, 1]} : vector<8x64xf32> to vector<8x32xf32>
    %198 = vector.extract_strided_slice %187 {offsets = [0, 64], sizes = [8, 32], strides = [1, 1]} : vector<8x128xf32> to vector<8x32xf32>
    %199 = vector.extract_strided_slice %187 {offsets = [0, 96], sizes = [8, 32], strides = [1, 1]} : vector<8x128xf32> to vector<8x32xf32>
    %200 = arith.mulf %196, %199 : vector<8x32xf32>
    %201 = arith.addf %198, %200 : vector<8x32xf32>
    %202 = math.tanh %201 : vector<8x32xf32>
    %cst_48 = arith.constant 1.000000e+00 : f32
    %203 = vector.broadcast %cst_48 : f32 to vector<8x32xf32>
    %204 = arith.subf %203, %197 : vector<8x32xf32>
    %205 = arith.mulf %204, %202 : vector<8x32xf32>
    %206 = arith.mulf %197, %159 : vector<8x32xf32>
    %207 = arith.addf %205, %206 : vector<8x32xf32>
    %208 = tpu.concatenate %159, %183 in 1 : vector<8x32xf32>, vector<8x32xf32> -> vector<8x64xf32>
    %209 = arith.truncf %208 : vector<8x64xf32> to vector<8x64xbf16>
    %cst_49 = arith.constant dense<0.000000e+00> : vector<8x128xf32>
    %210 = tpu.matmul %209, %4, %cst_49 {dimension_numbers = #tpu.dot_dimension_numbers<[1], [0], [0], [1], [0, 0, 1, 1], [], []>} : vector<8x64xbf16>, vector<64x128xbf16>, vector<8x128xf32> -> vector<8x128xf32>
    %211 = arith.addf %210, %13 : vector<8x128xf32>
    %212 = vector.extract_strided_slice %211 {offsets = [0, 0], sizes = [8, 64], strides = [1, 1]} : vector<8x128xf32> to vector<8x64xf32>
    %cst_50 = arith.constant 0.000000e+00 : f32
    %213 = vector.broadcast %cst_50 : f32 to vector<8x64xf32>
    %214 = arith.subf %213, %212 : vector<8x64xf32>
    %215 = math.exp %214 : vector<8x64xf32>
    %cst_51 = arith.constant 1.000000e+00 : f32
    %216 = vector.broadcast %cst_51 : f32 to vector<8x64xf32>
    %217 = arith.addf %216, %215 : vector<8x64xf32>
    %cst_52 = arith.constant 1.000000e+00 : f32
    %218 = vector.broadcast %cst_52 : f32 to vector<8x64xf32>
    %219 = arith.divf %218, %217 : vector<8x64xf32>
    %220 = vector.extract_strided_slice %219 {offsets = [0, 0], sizes = [8, 32], strides = [1, 1]} : vector<8x64xf32> to vector<8x32xf32>
    %221 = vector.extract_strided_slice %219 {offsets = [0, 32], sizes = [8, 32], strides = [1, 1]} : vector<8x64xf32> to vector<8x32xf32>
    %222 = vector.extract_strided_slice %211 {offsets = [0, 64], sizes = [8, 32], strides = [1, 1]} : vector<8x128xf32> to vector<8x32xf32>
    %223 = vector.extract_strided_slice %211 {offsets = [0, 96], sizes = [8, 32], strides = [1, 1]} : vector<8x128xf32> to vector<8x32xf32>
    %224 = arith.mulf %220, %223 : vector<8x32xf32>
    %225 = arith.addf %222, %224 : vector<8x32xf32>
    %226 = math.tanh %225 : vector<8x32xf32>
    %cst_53 = arith.constant 1.000000e+00 : f32
    %227 = vector.broadcast %cst_53 : f32 to vector<8x32xf32>
    %228 = arith.subf %227, %221 : vector<8x32xf32>
    %229 = arith.mulf %228, %226 : vector<8x32xf32>
    %230 = arith.mulf %221, %183 : vector<8x32xf32>
    %231 = arith.addf %229, %230 : vector<8x32xf32>
    %232 = arith.truncf %207 : vector<8x32xf32> to vector<8x32xbf16>
    %cst_54 = arith.constant dense<0.000000e+00> : vector<8x128xf32>
    %233 = tpu.matmul %232, %3, %cst_54 {dimension_numbers = #tpu.dot_dimension_numbers<[1], [0], [0], [1], [0, 0, 1, 1], [], []>} : vector<8x32xbf16>, vector<32x128xbf16>, vector<8x128xf32> -> vector<8x128xf32>
    %234 = vector.extract_strided_slice %9 {offsets = [40, 0], sizes = [8, 128], strides = [1, 1]} : vector<64x128xf32> to vector<8x128xf32>
    %235 = arith.addf %234, %233 : vector<8x128xf32>
    %236 = vector.extract_strided_slice %235 {offsets = [0, 0], sizes = [8, 64], strides = [1, 1]} : vector<8x128xf32> to vector<8x64xf32>
    %cst_55 = arith.constant 0.000000e+00 : f32
    %237 = vector.broadcast %cst_55 : f32 to vector<8x64xf32>
    %238 = arith.subf %237, %236 : vector<8x64xf32>
    %239 = math.exp %238 : vector<8x64xf32>
    %cst_56 = arith.constant 1.000000e+00 : f32
    %240 = vector.broadcast %cst_56 : f32 to vector<8x64xf32>
    %241 = arith.addf %240, %239 : vector<8x64xf32>
    %cst_57 = arith.constant 1.000000e+00 : f32
    %242 = vector.broadcast %cst_57 : f32 to vector<8x64xf32>
    %243 = arith.divf %242, %241 : vector<8x64xf32>
    %244 = vector.extract_strided_slice %243 {offsets = [0, 0], sizes = [8, 32], strides = [1, 1]} : vector<8x64xf32> to vector<8x32xf32>
    %245 = vector.extract_strided_slice %243 {offsets = [0, 32], sizes = [8, 32], strides = [1, 1]} : vector<8x64xf32> to vector<8x32xf32>
    %246 = vector.extract_strided_slice %235 {offsets = [0, 64], sizes = [8, 32], strides = [1, 1]} : vector<8x128xf32> to vector<8x32xf32>
    %247 = vector.extract_strided_slice %235 {offsets = [0, 96], sizes = [8, 32], strides = [1, 1]} : vector<8x128xf32> to vector<8x32xf32>
    %248 = arith.mulf %244, %247 : vector<8x32xf32>
    %249 = arith.addf %246, %248 : vector<8x32xf32>
    %250 = math.tanh %249 : vector<8x32xf32>
    %cst_58 = arith.constant 1.000000e+00 : f32
    %251 = vector.broadcast %cst_58 : f32 to vector<8x32xf32>
    %252 = arith.subf %251, %245 : vector<8x32xf32>
    %253 = arith.mulf %252, %250 : vector<8x32xf32>
    %254 = arith.mulf %245, %207 : vector<8x32xf32>
    %255 = arith.addf %253, %254 : vector<8x32xf32>
    %256 = tpu.concatenate %207, %231 in 1 : vector<8x32xf32>, vector<8x32xf32> -> vector<8x64xf32>
    %257 = arith.truncf %256 : vector<8x64xf32> to vector<8x64xbf16>
    %cst_59 = arith.constant dense<0.000000e+00> : vector<8x128xf32>
    %258 = tpu.matmul %257, %4, %cst_59 {dimension_numbers = #tpu.dot_dimension_numbers<[1], [0], [0], [1], [0, 0, 1, 1], [], []>} : vector<8x64xbf16>, vector<64x128xbf16>, vector<8x128xf32> -> vector<8x128xf32>
    %259 = arith.addf %258, %13 : vector<8x128xf32>
    %260 = vector.extract_strided_slice %259 {offsets = [0, 0], sizes = [8, 64], strides = [1, 1]} : vector<8x128xf32> to vector<8x64xf32>
    %cst_60 = arith.constant 0.000000e+00 : f32
    %261 = vector.broadcast %cst_60 : f32 to vector<8x64xf32>
    %262 = arith.subf %261, %260 : vector<8x64xf32>
    %263 = math.exp %262 : vector<8x64xf32>
    %cst_61 = arith.constant 1.000000e+00 : f32
    %264 = vector.broadcast %cst_61 : f32 to vector<8x64xf32>
    %265 = arith.addf %264, %263 : vector<8x64xf32>
    %cst_62 = arith.constant 1.000000e+00 : f32
    %266 = vector.broadcast %cst_62 : f32 to vector<8x64xf32>
    %267 = arith.divf %266, %265 : vector<8x64xf32>
    %268 = vector.extract_strided_slice %267 {offsets = [0, 0], sizes = [8, 32], strides = [1, 1]} : vector<8x64xf32> to vector<8x32xf32>
    %269 = vector.extract_strided_slice %267 {offsets = [0, 32], sizes = [8, 32], strides = [1, 1]} : vector<8x64xf32> to vector<8x32xf32>
    %270 = vector.extract_strided_slice %259 {offsets = [0, 64], sizes = [8, 32], strides = [1, 1]} : vector<8x128xf32> to vector<8x32xf32>
    %271 = vector.extract_strided_slice %259 {offsets = [0, 96], sizes = [8, 32], strides = [1, 1]} : vector<8x128xf32> to vector<8x32xf32>
    %272 = arith.mulf %268, %271 : vector<8x32xf32>
    %273 = arith.addf %270, %272 : vector<8x32xf32>
    %274 = math.tanh %273 : vector<8x32xf32>
    %cst_63 = arith.constant 1.000000e+00 : f32
    %275 = vector.broadcast %cst_63 : f32 to vector<8x32xf32>
    %276 = arith.subf %275, %269 : vector<8x32xf32>
    %277 = arith.mulf %276, %274 : vector<8x32xf32>
    %278 = arith.mulf %269, %231 : vector<8x32xf32>
    %279 = arith.addf %277, %278 : vector<8x32xf32>
    %280 = arith.truncf %255 : vector<8x32xf32> to vector<8x32xbf16>
    %cst_64 = arith.constant dense<0.000000e+00> : vector<8x128xf32>
    %281 = tpu.matmul %280, %3, %cst_64 {dimension_numbers = #tpu.dot_dimension_numbers<[1], [0], [0], [1], [0, 0, 1, 1], [], []>} : vector<8x32xbf16>, vector<32x128xbf16>, vector<8x128xf32> -> vector<8x128xf32>
    %282 = vector.extract_strided_slice %9 {offsets = [48, 0], sizes = [8, 128], strides = [1, 1]} : vector<64x128xf32> to vector<8x128xf32>
    %283 = arith.addf %282, %281 : vector<8x128xf32>
    %284 = vector.extract_strided_slice %283 {offsets = [0, 0], sizes = [8, 64], strides = [1, 1]} : vector<8x128xf32> to vector<8x64xf32>
    %cst_65 = arith.constant 0.000000e+00 : f32
    %285 = vector.broadcast %cst_65 : f32 to vector<8x64xf32>
    %286 = arith.subf %285, %284 : vector<8x64xf32>
    %287 = math.exp %286 : vector<8x64xf32>
    %cst_66 = arith.constant 1.000000e+00 : f32
    %288 = vector.broadcast %cst_66 : f32 to vector<8x64xf32>
    %289 = arith.addf %288, %287 : vector<8x64xf32>
    %cst_67 = arith.constant 1.000000e+00 : f32
    %290 = vector.broadcast %cst_67 : f32 to vector<8x64xf32>
    %291 = arith.divf %290, %289 : vector<8x64xf32>
    %292 = vector.extract_strided_slice %291 {offsets = [0, 0], sizes = [8, 32], strides = [1, 1]} : vector<8x64xf32> to vector<8x32xf32>
    %293 = vector.extract_strided_slice %291 {offsets = [0, 32], sizes = [8, 32], strides = [1, 1]} : vector<8x64xf32> to vector<8x32xf32>
    %294 = vector.extract_strided_slice %283 {offsets = [0, 64], sizes = [8, 32], strides = [1, 1]} : vector<8x128xf32> to vector<8x32xf32>
    %295 = vector.extract_strided_slice %283 {offsets = [0, 96], sizes = [8, 32], strides = [1, 1]} : vector<8x128xf32> to vector<8x32xf32>
    %296 = arith.mulf %292, %295 : vector<8x32xf32>
    %297 = arith.addf %294, %296 : vector<8x32xf32>
    %298 = math.tanh %297 : vector<8x32xf32>
    %cst_68 = arith.constant 1.000000e+00 : f32
    %299 = vector.broadcast %cst_68 : f32 to vector<8x32xf32>
    %300 = arith.subf %299, %293 : vector<8x32xf32>
    %301 = arith.mulf %300, %298 : vector<8x32xf32>
    %302 = arith.mulf %293, %255 : vector<8x32xf32>
    %303 = arith.addf %301, %302 : vector<8x32xf32>
    %304 = tpu.concatenate %255, %279 in 1 : vector<8x32xf32>, vector<8x32xf32> -> vector<8x64xf32>
    %305 = arith.truncf %304 : vector<8x64xf32> to vector<8x64xbf16>
    %cst_69 = arith.constant dense<0.000000e+00> : vector<8x128xf32>
    %306 = tpu.matmul %305, %4, %cst_69 {dimension_numbers = #tpu.dot_dimension_numbers<[1], [0], [0], [1], [0, 0, 1, 1], [], []>} : vector<8x64xbf16>, vector<64x128xbf16>, vector<8x128xf32> -> vector<8x128xf32>
    %307 = arith.addf %306, %13 : vector<8x128xf32>
    %308 = vector.extract_strided_slice %307 {offsets = [0, 0], sizes = [8, 64], strides = [1, 1]} : vector<8x128xf32> to vector<8x64xf32>
    %cst_70 = arith.constant 0.000000e+00 : f32
    %309 = vector.broadcast %cst_70 : f32 to vector<8x64xf32>
    %310 = arith.subf %309, %308 : vector<8x64xf32>
    %311 = math.exp %310 : vector<8x64xf32>
    %cst_71 = arith.constant 1.000000e+00 : f32
    %312 = vector.broadcast %cst_71 : f32 to vector<8x64xf32>
    %313 = arith.addf %312, %311 : vector<8x64xf32>
    %cst_72 = arith.constant 1.000000e+00 : f32
    %314 = vector.broadcast %cst_72 : f32 to vector<8x64xf32>
    %315 = arith.divf %314, %313 : vector<8x64xf32>
    %316 = vector.extract_strided_slice %315 {offsets = [0, 0], sizes = [8, 32], strides = [1, 1]} : vector<8x64xf32> to vector<8x32xf32>
    %317 = vector.extract_strided_slice %315 {offsets = [0, 32], sizes = [8, 32], strides = [1, 1]} : vector<8x64xf32> to vector<8x32xf32>
    %318 = vector.extract_strided_slice %307 {offsets = [0, 64], sizes = [8, 32], strides = [1, 1]} : vector<8x128xf32> to vector<8x32xf32>
    %319 = vector.extract_strided_slice %307 {offsets = [0, 96], sizes = [8, 32], strides = [1, 1]} : vector<8x128xf32> to vector<8x32xf32>
    %320 = arith.mulf %316, %319 : vector<8x32xf32>
    %321 = arith.addf %318, %320 : vector<8x32xf32>
    %322 = math.tanh %321 : vector<8x32xf32>
    %cst_73 = arith.constant 1.000000e+00 : f32
    %323 = vector.broadcast %cst_73 : f32 to vector<8x32xf32>
    %324 = arith.subf %323, %317 : vector<8x32xf32>
    %325 = arith.mulf %324, %322 : vector<8x32xf32>
    %326 = arith.mulf %317, %279 : vector<8x32xf32>
    %327 = arith.addf %325, %326 : vector<8x32xf32>
    %328 = arith.truncf %303 : vector<8x32xf32> to vector<8x32xbf16>
    %cst_74 = arith.constant dense<0.000000e+00> : vector<8x128xf32>
    %329 = tpu.matmul %328, %3, %cst_74 {dimension_numbers = #tpu.dot_dimension_numbers<[1], [0], [0], [1], [0, 0, 1, 1], [], []>} : vector<8x32xbf16>, vector<32x128xbf16>, vector<8x128xf32> -> vector<8x128xf32>
    %330 = vector.extract_strided_slice %9 {offsets = [56, 0], sizes = [8, 128], strides = [1, 1]} : vector<64x128xf32> to vector<8x128xf32>
    %331 = arith.addf %330, %329 : vector<8x128xf32>
    %332 = vector.extract_strided_slice %331 {offsets = [0, 0], sizes = [8, 64], strides = [1, 1]} : vector<8x128xf32> to vector<8x64xf32>
    %cst_75 = arith.constant 0.000000e+00 : f32
    %333 = vector.broadcast %cst_75 : f32 to vector<8x64xf32>
    %334 = arith.subf %333, %332 : vector<8x64xf32>
    %335 = math.exp %334 : vector<8x64xf32>
    %cst_76 = arith.constant 1.000000e+00 : f32
    %336 = vector.broadcast %cst_76 : f32 to vector<8x64xf32>
    %337 = arith.addf %336, %335 : vector<8x64xf32>
    %cst_77 = arith.constant 1.000000e+00 : f32
    %338 = vector.broadcast %cst_77 : f32 to vector<8x64xf32>
    %339 = arith.divf %338, %337 : vector<8x64xf32>
    %340 = vector.extract_strided_slice %339 {offsets = [0, 0], sizes = [8, 32], strides = [1, 1]} : vector<8x64xf32> to vector<8x32xf32>
    %341 = vector.extract_strided_slice %339 {offsets = [0, 32], sizes = [8, 32], strides = [1, 1]} : vector<8x64xf32> to vector<8x32xf32>
    %342 = vector.extract_strided_slice %331 {offsets = [0, 64], sizes = [8, 32], strides = [1, 1]} : vector<8x128xf32> to vector<8x32xf32>
    %343 = vector.extract_strided_slice %331 {offsets = [0, 96], sizes = [8, 32], strides = [1, 1]} : vector<8x128xf32> to vector<8x32xf32>
    %344 = arith.mulf %340, %343 : vector<8x32xf32>
    %345 = arith.addf %342, %344 : vector<8x32xf32>
    %346 = math.tanh %345 : vector<8x32xf32>
    %cst_78 = arith.constant 1.000000e+00 : f32
    %347 = vector.broadcast %cst_78 : f32 to vector<8x32xf32>
    %348 = arith.subf %347, %341 : vector<8x32xf32>
    %349 = arith.mulf %348, %346 : vector<8x32xf32>
    %350 = arith.mulf %341, %303 : vector<8x32xf32>
    %351 = arith.addf %349, %350 : vector<8x32xf32>
    %352 = tpu.concatenate %303, %327 in 1 : vector<8x32xf32>, vector<8x32xf32> -> vector<8x64xf32>
    %353 = arith.truncf %352 : vector<8x64xf32> to vector<8x64xbf16>
    %cst_79 = arith.constant dense<0.000000e+00> : vector<8x128xf32>
    %354 = tpu.matmul %353, %4, %cst_79 {dimension_numbers = #tpu.dot_dimension_numbers<[1], [0], [0], [1], [0, 0, 1, 1], [], []>} : vector<8x64xbf16>, vector<64x128xbf16>, vector<8x128xf32> -> vector<8x128xf32>
    %355 = arith.addf %354, %13 : vector<8x128xf32>
    %356 = vector.extract_strided_slice %355 {offsets = [0, 0], sizes = [8, 64], strides = [1, 1]} : vector<8x128xf32> to vector<8x64xf32>
    %cst_80 = arith.constant 0.000000e+00 : f32
    %357 = vector.broadcast %cst_80 : f32 to vector<8x64xf32>
    %358 = arith.subf %357, %356 : vector<8x64xf32>
    %359 = math.exp %358 : vector<8x64xf32>
    %cst_81 = arith.constant 1.000000e+00 : f32
    %360 = vector.broadcast %cst_81 : f32 to vector<8x64xf32>
    %361 = arith.addf %360, %359 : vector<8x64xf32>
    %cst_82 = arith.constant 1.000000e+00 : f32
    %362 = vector.broadcast %cst_82 : f32 to vector<8x64xf32>
    %363 = arith.divf %362, %361 : vector<8x64xf32>
    %364 = vector.extract_strided_slice %363 {offsets = [0, 0], sizes = [8, 32], strides = [1, 1]} : vector<8x64xf32> to vector<8x32xf32>
    %365 = vector.extract_strided_slice %363 {offsets = [0, 32], sizes = [8, 32], strides = [1, 1]} : vector<8x64xf32> to vector<8x32xf32>
    %366 = vector.extract_strided_slice %355 {offsets = [0, 64], sizes = [8, 32], strides = [1, 1]} : vector<8x128xf32> to vector<8x32xf32>
    %367 = vector.extract_strided_slice %355 {offsets = [0, 96], sizes = [8, 32], strides = [1, 1]} : vector<8x128xf32> to vector<8x32xf32>
    %368 = arith.mulf %364, %367 : vector<8x32xf32>
    %369 = arith.addf %366, %368 : vector<8x32xf32>
    %370 = math.tanh %369 : vector<8x32xf32>
    %cst_83 = arith.constant 1.000000e+00 : f32
    %371 = vector.broadcast %cst_83 : f32 to vector<8x32xf32>
    %372 = arith.subf %371, %365 : vector<8x32xf32>
    %373 = arith.mulf %372, %370 : vector<8x32xf32>
    %374 = arith.mulf %365, %327 : vector<8x32xf32>
    %375 = arith.addf %373, %374 : vector<8x32xf32>
    %376 = tpu.concatenate %351, %375 in 1 : vector<8x32xf32>, vector<8x32xf32> -> vector<8x64xf32>
    %377 = arith.truncf %376 : vector<8x64xf32> to vector<8x64xbf16>
    %cst_84 = arith.constant dense<0.000000e+00> : vector<8x128xf32>
    %378 = tpu.matmul %377, %4, %cst_84 {dimension_numbers = #tpu.dot_dimension_numbers<[1], [0], [0], [1], [0, 0, 1, 1], [], []>} : vector<8x64xbf16>, vector<64x128xbf16>, vector<8x128xf32> -> vector<8x128xf32>
    %379 = arith.addf %378, %13 : vector<8x128xf32>
    %380 = vector.extract_strided_slice %379 {offsets = [0, 0], sizes = [8, 64], strides = [1, 1]} : vector<8x128xf32> to vector<8x64xf32>
    %cst_85 = arith.constant 0.000000e+00 : f32
    %381 = vector.broadcast %cst_85 : f32 to vector<8x64xf32>
    %382 = arith.subf %381, %380 : vector<8x64xf32>
    %383 = math.exp %382 : vector<8x64xf32>
    %cst_86 = arith.constant 1.000000e+00 : f32
    %384 = vector.broadcast %cst_86 : f32 to vector<8x64xf32>
    %385 = arith.addf %384, %383 : vector<8x64xf32>
    %cst_87 = arith.constant 1.000000e+00 : f32
    %386 = vector.broadcast %cst_87 : f32 to vector<8x64xf32>
    %387 = arith.divf %386, %385 : vector<8x64xf32>
    %388 = vector.extract_strided_slice %387 {offsets = [0, 0], sizes = [8, 32], strides = [1, 1]} : vector<8x64xf32> to vector<8x32xf32>
    %389 = vector.extract_strided_slice %387 {offsets = [0, 32], sizes = [8, 32], strides = [1, 1]} : vector<8x64xf32> to vector<8x32xf32>
    %390 = vector.extract_strided_slice %379 {offsets = [0, 64], sizes = [8, 32], strides = [1, 1]} : vector<8x128xf32> to vector<8x32xf32>
    %391 = vector.extract_strided_slice %379 {offsets = [0, 96], sizes = [8, 32], strides = [1, 1]} : vector<8x128xf32> to vector<8x32xf32>
    %392 = arith.mulf %388, %391 : vector<8x32xf32>
    %393 = arith.addf %390, %392 : vector<8x32xf32>
    %394 = math.tanh %393 : vector<8x32xf32>
    %cst_88 = arith.constant 1.000000e+00 : f32
    %395 = vector.broadcast %cst_88 : f32 to vector<8x32xf32>
    %396 = arith.subf %395, %389 : vector<8x32xf32>
    %397 = arith.mulf %396, %394 : vector<8x32xf32>
    %398 = arith.mulf %389, %375 : vector<8x32xf32>
    %399 = arith.addf %397, %398 : vector<8x32xf32>
    %c0_89 = arith.constant 0 : index
    %c0_90 = arith.constant 0 : index
    %400 = vector.load %arg1[%c0_89, %c0_90] : memref<8x8xf32, #tpu.memory_space<vmem>>, vector<8x8xf32>
    %401 = arith.truncf %400 : vector<8x8xf32> to vector<8x8xbf16>
    %c112 = arith.constant 112 : index
    %c0_91 = arith.constant 0 : index
    %402 = vector.load %arg2[%c112, %c0_91] : memref<304x128xbf16, #tpu.memory_space<vmem>>, vector<8x32xbf16>
    %cst_92 = arith.constant dense<0.000000e+00> : vector<8x32xf32>
    %403 = tpu.matmul %401, %402, %cst_92 {dimension_numbers = #tpu.dot_dimension_numbers<[1], [0], [0], [1], [0, 0, 1, 1], [], []>} : vector<8x8xbf16>, vector<8x32xbf16>, vector<8x32xf32> -> vector<8x32xf32>
    %c290 = arith.constant 290 : index
    %c0_93 = arith.constant 0 : index
    %404 = vector.load %arg2[%c290, %c0_93] : memref<304x128xbf16, #tpu.memory_space<vmem>>, vector<1x32xbf16>
    %405 = arith.extf %404 : vector<1x32xbf16> to vector<1x32xf32>
    %406 = vector.broadcast %405 : vector<1x32xf32> to vector<8x32xf32>
    %407 = arith.addf %403, %406 : vector<8x32xf32>
    %cst_94 = arith.constant 0.000000e+00 : f32
    %408 = vector.broadcast %cst_94 : f32 to vector<8x32xf32>
    %409 = arith.cmpf ogt, %407, %408 : vector<8x32xf32>
    %cst_95 = arith.constant 0.00999999977 : f32
    %410 = vector.broadcast %cst_95 : f32 to vector<8x32xf32>
    %411 = arith.mulf %410, %407 : vector<8x32xf32>
    %412 = arith.select %409, %407, %411 : vector<8x32xi1>, vector<8x32xf32>
    %c291 = arith.constant 291 : index
    %c0_96 = arith.constant 0 : index
    %413 = vector.load %arg2[%c291, %c0_96] : memref<304x128xbf16, #tpu.memory_space<vmem>>, vector<1x32xbf16>
    %414 = arith.extf %413 : vector<1x32xbf16> to vector<1x32xf32>
    %415 = vector.broadcast %414 : vector<1x32xf32> to vector<8x32xf32>
    %416 = arith.mulf %412, %415 : vector<8x32xf32>
    %c292 = arith.constant 292 : index
    %c0_97 = arith.constant 0 : index
    %417 = vector.load %arg2[%c292, %c0_97] : memref<304x128xbf16, #tpu.memory_space<vmem>>, vector<1x32xbf16>
    %418 = arith.extf %417 : vector<1x32xbf16> to vector<1x32xf32>
    %419 = vector.broadcast %418 : vector<1x32xf32> to vector<8x32xf32>
    %420 = arith.addf %416, %419 : vector<8x32xf32>
    %421 = arith.truncf %420 : vector<8x32xf32> to vector<8x32xbf16>
    %c128 = arith.constant 128 : index
    %c0_98 = arith.constant 0 : index
    %422 = vector.load %arg2[%c128, %c0_98] : memref<304x128xbf16, #tpu.memory_space<vmem>>, vector<32x32xbf16>
    %cst_99 = arith.constant dense<0.000000e+00> : vector<8x32xf32>
    %423 = tpu.matmul %421, %422, %cst_99 {dimension_numbers = #tpu.dot_dimension_numbers<[1], [0], [0], [1], [0, 0, 1, 1], [], []>} : vector<8x32xbf16>, vector<32x32xbf16>, vector<8x32xf32> -> vector<8x32xf32>
    %c293 = arith.constant 293 : index
    %c0_100 = arith.constant 0 : index
    %424 = vector.load %arg2[%c293, %c0_100] : memref<304x128xbf16, #tpu.memory_space<vmem>>, vector<1x32xbf16>
    %425 = arith.extf %424 : vector<1x32xbf16> to vector<1x32xf32>
    %426 = vector.broadcast %425 : vector<1x32xf32> to vector<8x32xf32>
    %427 = arith.addf %423, %426 : vector<8x32xf32>
    %428 = arith.truncf %399 : vector<8x32xf32> to vector<8x32xbf16>
    %c160 = arith.constant 160 : index
    %c0_101 = arith.constant 0 : index
    %429 = vector.load %arg2[%c160, %c0_101] : memref<304x128xbf16, #tpu.memory_space<vmem>>, vector<32x32xbf16>
    %cst_102 = arith.constant dense<0.000000e+00> : vector<8x32xf32>
    %430 = tpu.matmul %428, %429, %cst_102 {dimension_numbers = #tpu.dot_dimension_numbers<[1], [0], [0], [1], [0, 0, 1, 1], [], []>} : vector<8x32xbf16>, vector<32x32xbf16>, vector<8x32xf32> -> vector<8x32xf32>
    %431 = arith.truncf %427 : vector<8x32xf32> to vector<8x32xbf16>
    %c192 = arith.constant 192 : index
    %c0_103 = arith.constant 0 : index
    %432 = vector.load %arg2[%c192, %c0_103] : memref<304x128xbf16, #tpu.memory_space<vmem>>, vector<32x32xbf16>
    %cst_104 = arith.constant dense<0.000000e+00> : vector<8x32xf32>
    %433 = tpu.matmul %431, %432, %cst_104 {dimension_numbers = #tpu.dot_dimension_numbers<[1], [0], [0], [1], [0, 0, 1, 1], [], []>} : vector<8x32xbf16>, vector<32x32xbf16>, vector<8x32xf32> -> vector<8x32xf32>
    %434 = arith.addf %430, %433 : vector<8x32xf32>
    %c294 = arith.constant 294 : index
    %c0_105 = arith.constant 0 : index
    %435 = vector.load %arg2[%c294, %c0_105] : memref<304x128xbf16, #tpu.memory_space<vmem>>, vector<1x32xbf16>
    %436 = arith.extf %435 : vector<1x32xbf16> to vector<1x32xf32>
    %437 = vector.broadcast %436 : vector<1x32xf32> to vector<8x32xf32>
    %438 = arith.addf %434, %437 : vector<8x32xf32>
    %cst_106 = arith.constant 0.000000e+00 : f32
    %439 = vector.broadcast %cst_106 : f32 to vector<8x32xf32>
    %440 = arith.cmpf ogt, %438, %439 : vector<8x32xf32>
    %cst_107 = arith.constant 0.00999999977 : f32
    %441 = vector.broadcast %cst_107 : f32 to vector<8x32xf32>
    %442 = arith.mulf %441, %438 : vector<8x32xf32>
    %443 = arith.select %440, %438, %442 : vector<8x32xi1>, vector<8x32xf32>
    %444 = arith.truncf %443 : vector<8x32xf32> to vector<8x32xbf16>
    %c224 = arith.constant 224 : index
    %c0_108 = arith.constant 0 : index
    %445 = vector.load %arg2[%c224, %c0_108] : memref<304x128xbf16, #tpu.memory_space<vmem>>, vector<32x32xbf16>
    %cst_109 = arith.constant dense<0.000000e+00> : vector<8x32xf32>
    %446 = tpu.matmul %444, %445, %cst_109 {dimension_numbers = #tpu.dot_dimension_numbers<[1], [0], [0], [1], [0, 0, 1, 1], [], []>} : vector<8x32xbf16>, vector<32x32xbf16>, vector<8x32xf32> -> vector<8x32xf32>
    %c295 = arith.constant 295 : index
    %c0_110 = arith.constant 0 : index
    %447 = vector.load %arg2[%c295, %c0_110] : memref<304x128xbf16, #tpu.memory_space<vmem>>, vector<1x32xbf16>
    %448 = arith.extf %447 : vector<1x32xbf16> to vector<1x32xf32>
    %449 = vector.broadcast %448 : vector<1x32xf32> to vector<8x32xf32>
    %450 = arith.addf %446, %449 : vector<8x32xf32>
    %cst_111 = arith.constant 0.000000e+00 : f32
    %451 = vector.broadcast %cst_111 : f32 to vector<8x32xf32>
    %452 = arith.cmpf ogt, %450, %451 : vector<8x32xf32>
    %cst_112 = arith.constant 0.00999999977 : f32
    %453 = vector.broadcast %cst_112 : f32 to vector<8x32xf32>
    %454 = arith.mulf %453, %450 : vector<8x32xf32>
    %455 = arith.select %452, %450, %454 : vector<8x32xi1>, vector<8x32xf32>
    %456 = arith.truncf %455 : vector<8x32xf32> to vector<8x32xbf16>
    %c256 = arith.constant 256 : index
    %c0_113 = arith.constant 0 : index
    %457 = vector.load %arg2[%c256, %c0_113] : memref<304x128xbf16, #tpu.memory_space<vmem>>, vector<32x4xbf16>
    %cst_114 = arith.constant dense<0.000000e+00> : vector<8x4xf32>
    %458 = tpu.matmul %456, %457, %cst_114 {dimension_numbers = #tpu.dot_dimension_numbers<[1], [0], [0], [1], [0, 0, 1, 1], [], []>} : vector<8x32xbf16>, vector<32x4xbf16>, vector<8x4xf32> -> vector<8x4xf32>
    %c296 = arith.constant 296 : index
    %c0_115 = arith.constant 0 : index
    %459 = vector.load %arg2[%c296, %c0_115] : memref<304x128xbf16, #tpu.memory_space<vmem>>, vector<1x4xbf16>
    %460 = arith.extf %459 : vector<1x4xbf16> to vector<1x4xf32>
    %461 = vector.broadcast %460 : vector<1x4xf32> to vector<8x4xf32>
    %462 = arith.addf %458, %461 : vector<8x4xf32>
    %c0_116 = arith.constant 0 : index
    %c0_117 = arith.constant 0 : index
    %463 = vector.load %arg3[%c0_116, %c0_117] : memref<8x4xf32, #tpu.memory_space<vmem>>, vector<8x4xf32>
    tpu.vector_store %arg3[%c0_116, %c0_117], %462 {strides = array<i32>} : memref<8x4xf32, #tpu.memory_space<vmem>>, vector<8x4xf32>,
    return
  }
}

</mosaic_0001>

<llo_original>
// kernel: grunet_forward.1
$region0: #{grunet_forward.1}
  #allocation0 [shape = 'u32[]', space=smem, size = 0x4, offset = 0x4, fixed_abs, tag = 'smem constant byte address 0x4 - core index']
  #allocation1 [shape = 'u32[72,128]{1,0:T(1,128)}', space=vmem, size = 0x9000, scoped, tag = 'internal scratch']
  %s0 = inlined_call_operand.vmem [shape: f32[64,16], index: 0, kind: input, shape index: {}]
  %s1 = inlined_call_operand.vmem [shape: f32[8,8], index: 1, kind: input, shape index: {}]
  %s2 = inlined_call_operand.hbm [shape: bf16[304,128], index: 2, kind: input, shape index: {}]
  %s3 = inlined_call_operand.vmem [shape: f32[8,4], index: 3, kind: output, shape index: {}]
  %s4 = sld [smem:[#allocation0]]
  $region26: #{grunet_forward.1} parent=0
    _
  %s6 = ssub.s32 1, %s4
  %s7 = scalar_select 0, %s6, %s4
  $region1: #{grunet_forward.1} parent=0
    #allocation2 [shape = 'u8[77824]{0}', space=vmem, size = 0x13000, scoped, tag = 'input window, operand 2, single buffered']
    #allocation3 [shape = 's32[1]{0}', space=sflag, size = 0x4, scoped, tag = 'scoped memory for grunet_forward.1']
    %8 = vsyncpa [#allocation3], 0
    // Predicated region
    $region2: #{grunet_forward.1} parent=1 // pred_check
      _
    $region3: #{grunet_forward.1} parent=1 // pred_check_branch
      %10 = sbr.rel (0) target = $region5
    $region4: #{grunet_forward.1} parent=1 // pred_region
      _
    $region5: #{grunet_forward.1} parent=1 // pred_fallthru
      _
    // Predicated region
    $region6: #{grunet_forward.1} parent=1 // pred_check
      _
    $region7: #{grunet_forward.1} parent=1 // pred_check_branch
      %12 = sbr.rel (0) target = $region9
    $region8: #{grunet_forward.1} parent=1 // pred_region
      _
    $region9: #{grunet_forward.1} parent=1 // pred_fallthru
      _
    // Predicated region
    $region10: #{grunet_forward.1} parent=1 // pred_check
      _
    $region11: #{grunet_forward.1} parent=1 // pred_check_branch
      %14 = sbr.rel (0) target = $region13
    $region12: #{grunet_forward.1} parent=1 // pred_region
      %16 = vsyncadd [#allocation3], 0
      %s17 = sshll.u32 %s2, 4
      %s18 = int_to_ptr.hbm [resolvable:$true] %s17
      %s19 = sshll.u32 [#allocation2], 4
      %s20 = int_to_ptr.vmem [resolvable:$true] %s19
      %25 = dma.hbm_to_vmem [thread:$0]  %s18, 2432, %s20, [#allocation3], 64, 64, 4
    $region13: #{grunet_forward.1} parent=1 // pred_fallthru
      _
    // Predicated region
    $region14: #{grunet_forward.1} parent=1 // pred_check
      _
    $region15: #{grunet_forward.1} parent=1 // pred_check_branch
      %27 = sbr.rel (0) target = $region17
    $region16: #{grunet_forward.1} parent=1 // pred_region
      %29 = dma.done [#allocation3], 2432
    $region17: #{grunet_forward.1} parent=1 // pred_fallthru
      _
    %v31 = vld [vmem:[%s0] sm:$0xff]
    %v32 = vld [vmem:[%s0 + $0x8] sm:$0xff]
    %v33 = vld [vmem:[%s0 + $0x10] sm:$0xff]
    %v34 = vld [vmem:[%s0 + $0x18] sm:$0xff]
    %v35 = vld [vmem:[%s0 + $0x20] sm:$0xff]
    %v36 = vld [vmem:[%s0 + $0x28] sm:$0xff]
    %v37 = vld [vmem:[%s0 + $0x30] sm:$0xff]
    %v38 = vld [vmem:[%s0 + $0x38] sm:$0xff]
    %v39 = vpack.c.bf16 %v32, %v31
    %v40 = vpack.c.bf16 %v34, %v33
    %v41 = vpack.c.bf16 %v36, %v35
    %v42 = vpack.c.bf16 %v38, %v37
    %v43 = vld [vmem:[#allocation2] sm:$0xf]
    %v44 = vld [vmem:[#allocation2 + $0x4] sm:$0xf]
    %v45 = vld [vmem:[#allocation2 + $0x8] sm:$0xf]
    %v46 = vld [vmem:[#allocation2 + $0xc] sm:$0xf]
    %v47 = vld [vmem:[#allocation2 + $0x10] sm:$0xf]
    %v48 = vld [vmem:[#allocation2 + $0x14] sm:$0xf]
    %v49 = vld [vmem:[#allocation2 + $0x18] sm:$0xf]
    %v50 = vld [vmem:[#allocation2 + $0x1c] sm:$0xf]
    %v51 = vld [vmem:[#allocation2 + $0x20] sm:$0xf]
    %v52 = vld [vmem:[#allocation2 + $0x24] sm:$0xf]
    %v53 = vld [vmem:[#allocation2 + $0x28] sm:$0xf]
    %v54 = vld [vmem:[#allocation2 + $0x2c] sm:$0xf]
    %v55 = vld [vmem:[#allocation2 + $0x30] sm:$0xf]
    %v56 = vld [vmem:[#allocation2 + $0x34] sm:$0xf]
    %v57 = vld [vmem:[#allocation2 + $0x90] sm:$0x1]
    %v58 = vunpack.c.l.bf16 %v57
    %v59 = vperm.slane %v58, 0
    %v62 = vunpack.c.l.b16 %v43
    %v63 = vunpack.c.l.b16 %v44
    %v64 = vpack.c.b16 %v63, %v62
    %vm66 = vcmask 130048
    %v68 = vsel %vm66, %v39, 0
    %v71 = vsel %vm66, %v40, 0
    %v74 = vsel %vm66, %v41, 0
    %v77 = vsel %vm66, %v42, 0
    %79 = vmatpush.bf16.msra.mxu0 0
    %80 = vmatpush.bf16.msra.mxu0 0
    %81 = vmatpush.bf16.msra.mxu0 0
    %82 = vmatpush.bf16.msra.mxu0 0
    %83 = vmatpush.bf16.msra.mxu0 0
    %84 = vmatpush.bf16.msra.mxu0 0
    %85 = vmatpush.bf16.msra.mxu0 0
    %86 = vmatpush.bf16.msra.mxu0 %v64
    %87 = vmatmul.bf16.gmra.mxu0 %v68
    %v88 = vpop.f32.mrf.mxu0
    %v89 = vadd.f32 %v59, %v88
    %v90 = vpop.f32.mrf.mxu0
    %v91 = vadd.f32 %v59, %v90
    %92 = vmatmul.bf16.gmra.mxu0 %v71
    %v93 = vpop.f32.mrf.mxu0
    %v94 = vadd.f32 %v59, %v93
    %v95 = vpop.f32.mrf.mxu0
    %v96 = vadd.f32 %v59, %v95
    %97 = vmatmul.bf16.gmra.mxu0 %v74
    %v98 = vpop.f32.mrf.mxu0
    %v99 = vadd.f32 %v59, %v98
    %v100 = vpop.f32.mrf.mxu0
    %v101 = vadd.f32 %v59, %v100
    %102 = vmatmul.bf16.gmra.mxu0 %v77
    %v103 = vpop.f32.mrf.mxu0
    %v104 = vadd.f32 %v59, %v103
    %v105 = vpop.f32.mrf.mxu0
    %v106 = vadd.f32 %v59, %v105
    %107 = vdwg.mxu0
    %v108 = vperm.slane %v58, 1
    %v113 = vunpack.c.l.b16 %v45
    %v114 = vunpack.c.l.b16 %v46
    %v115 = vunpack.c.l.b16 %v47
    %v116 = vunpack.c.l.b16 %v48
    %v117 = vpack.c.b16 %v114, %v113
    %v118 = vpack.c.b16 %v116, %v115
    %vm121 = vcmask 261120
    %v123 = vsel %vm121, 0, 0
    %125 = vmatpush.bf16.msra.mxu0 0
    %126 = vmatpush.bf16.msra.mxu0 0
    %127 = vmatpush.bf16.msra.mxu0 0
    %128 = vmatpush.bf16.msra.mxu0 0
    %129 = vmatpush.bf16.msra.mxu0 0
    %130 = vmatpush.bf16.msra.mxu0 0
    %131 = vmatpush.bf16.msra.mxu0 %v118
    %132 = vmatpush.bf16.msra.mxu0 %v117
    %133 = vmatmul.bf16.gmra.mxu0 %v123
    %v134 = vpop.f32.mrf.mxu0
    %v135 = vadd.f32 0.0, %v134
    %v136 = vpop.f32.mrf.mxu0
    %137 = vdwg.mxu0
    %v138 = vadd.f32 %v89, %v135
    %v139 = vsub.f32 0.0, %v138
    %v140 = vmul.f32 %v139, 1.442695
    %v141 = vpow.pop %v140
    %v142 = vadd.f32 %v141, 1.0
    %v143 = vrcp.pop %v142
    %v144 = vmul.f32 %v142, %v143
    %v145 = vsub.f32 1.0, %v144
    %v146 = vmul.f32 %v143, %v145
    %v147 = vadd.f32 %v143, %v146
    %vm148 = vweird.f32 %v142
    %vm149 = vweird.f32 %v143
    %vm150 = vmor %vm148, %vm149
    %v151 = vsel %vm150, %v143, %v147
    %v152 = vand.u32 2147483647, %v142
    %vm153 = vcmp.eq.f32.partialorder %v152, 8.507059e+37
    %v154 = vand.u32 %v142, 2147483648
    %v155 = vor.u32 1.1754944e-38, %v154
    %v156 = vsel %vm153, %v155, %v151
    %v157 = vmul.f32 1.0, %v156
    %159 = vrot.lane.b32.xlu0 %v138, 32
    %v160 = vpop.permute.xlu0 %159
    %v162 = vmul.f32 %v157, %v160
    %164 = vrot.lane.b32.xlu0 %v162, 64
    %v165 = vpop.permute.xlu0 %164
    %v167 = vadd.f32 %v138, %v165
    %v168 = vtanh.pop %v167
    %v169 = vsub.f32 1.0, %v157
    %171 = vrot.lane.b32.xlu0 %v168, 96
    %v172 = vpop.permute.xlu0 %171
    %v174 = vmul.f32 %v169, %v172
    %v175 = vmul.f32 %v157, 0.0
    %v176 = vadd.f32 %v174, %v175
    %v177 = vpack.c.bf16 %v176, %v176
    %179 = vrot.lane.b32.xlu0 %v177, 96
    %v180 = vpop.permute.xlu0 %179
    %v182 = vsel %vm121, %v180, 0
    %184 = vmatpush.bf16.msra.mxu0 0
    %185 = vmatpush.bf16.msra.mxu0 0
    %186 = vmatpush.bf16.msra.mxu0 0
    %187 = vmatpush.bf16.msra.mxu0 0
    %188 = vmatpush.bf16.msra.mxu0 0
    %189 = vmatpush.bf16.msra.mxu0 0
    %190 = vmatpush.bf16.msra.mxu0 %v118
    %191 = vmatpush.bf16.msra.mxu0 %v117
    %192 = vmatmul.bf16.gmra.mxu0 %v182
    %v193 = vpop.f32.mrf.mxu0
    %v194 = vadd.f32 0.0, %v193
    %v195 = vpop.f32.mrf.mxu0
    %196 = vdwg.mxu0
    %v197 = vadd.f32 %v91, %v194
    %v198 = vsub.f32 0.0, %v197
    %v199 = vmul.f32 %v198, 1.442695
    %v200 = vpow.pop %v199
    %v201 = vadd.f32 %v200, 1.0
    %v202 = vrcp.pop %v201
    %v203 = vmul.f32 %v201, %v202
    %v204 = vsub.f32 1.0, %v203
    %v205 = vmul.f32 %v202, %v204
    %v206 = vadd.f32 %v202, %v205
    %vm207 = vweird.f32 %v201
    %vm208 = vweird.f32 %v202
    %vm209 = vmor %vm207, %vm208
    %v210 = vsel %vm209, %v202, %v206
    %v211 = vand.u32 2147483647, %v201
    %vm212 = vcmp.eq.f32.partialorder %v211, 8.507059e+37
    %v213 = vand.u32 %v201, 2147483648
    %v214 = vor.u32 1.1754944e-38, %v213
    %v215 = vsel %vm212, %v214, %v210
    %v216 = vmul.f32 1.0, %v215
    %218 = vrot.lane.b32.xlu0 %v197, 32
    %v219 = vpop.permute.xlu0 %218
    %v221 = vmul.f32 %v216, %v219
    %223 = vrot.lane.b32.xlu0 %v221, 64
    %v224 = vpop.permute.xlu0 %223
    %v226 = vadd.f32 %v197, %v224
    %v227 = vtanh.pop %v226
    %v228 = vsub.f32 1.0, %v216
    %230 = vrot.lane.b32.xlu0 %v227, 96
    %v231 = vpop.permute.xlu0 %230
    %v233 = vmul.f32 %v228, %v231
    %v234 = vmul.f32 %v216, %v176
    %v235 = vadd.f32 %v233, %v234
    %237 = vrot.lane.b32.xlu0 %v176, 96
    %v238 = vpop.permute.xlu0 %237
    %v240 = vsel %vm121, %v238, 0.0
    %v241 = vpack.c.bf16 %v240, %v240
    %v250 = vunpack.c.l.b16 %v49
    %v251 = vunpack.c.l.b16 %v50
    %v252 = vunpack.c.l.b16 %v51
    %v253 = vunpack.c.l.b16 %v52
    %v254 = vunpack.c.l.b16 %v53
    %v255 = vunpack.c.l.b16 %v54
    %v256 = vunpack.c.l.b16 %v55
    %v257 = vunpack.c.l.b16 %v56
    %v258 = vpack.c.b16 %v251, %v250
    %v259 = vpack.c.b16 %v253, %v252
    %v260 = vpack.c.b16 %v255, %v254
    %v261 = vpack.c.b16 %v257, %v256
    %vm266 = vcmask 523264
    %v268 = vsel %vm266, %v241, 0
    %270 = vmatpush.bf16.msra.mxu0 0
    %271 = vmatpush.bf16.msra.mxu0 0
    %272 = vmatpush.bf16.msra.mxu0 0
    %273 = vmatpush.bf16.msra.mxu0 0
    %274 = vmatpush.bf16.msra.mxu0 %v261
    %275 = vmatpush.bf16.msra.mxu0 %v260
    %276 = vmatpush.bf16.msra.mxu0 %v259
    %277 = vmatpush.bf16.msra.mxu0 %v258
    %278 = vmatmul.bf16.gmra.mxu0 %v268
    %v279 = vpop.f32.mrf.mxu0
    %v280 = vadd.f32 %v108, %v279
    %v281 = vpop.f32.mrf.mxu0
    %282 = vdwg.mxu0
    %v283 = vsub.f32 0.0, %v280
    %v284 = vmul.f32 %v283, 1.442695
    %v285 = vpow.pop %v284
    %v286 = vadd.f32 %v285, 1.0
    %v287 = vrcp.pop %v286
    %v288 = vmul.f32 %v286, %v287
    %v289 = vsub.f32 1.0, %v288
    %v290 = vmul.f32 %v287, %v289
    %v291 = vadd.f32 %v287, %v290
    %vm292 = vweird.f32 %v286
    %vm293 = vweird.f32 %v287
    %vm294 = vmor %vm292, %vm293
    %v295 = vsel %vm294, %v287, %v291
    %v296 = vand.u32 2147483647, %v286
    %vm297 = vcmp.eq.f32.partialorder %v296, 8.507059e+37
    %v298 = vand.u32 %v286, 2147483648
    %v299 = vor.u32 1.1754944e-38, %v298
    %v300 = vsel %vm297, %v299, %v295
    %v301 = vmul.f32 1.0, %v300
    %303 = vrot.lane.b32.xlu0 %v280, 32
    %v304 = vpop.permute.xlu0 %303
    %v306 = vmul.f32 %v301, %v304
    %308 = vrot.lane.b32.xlu0 %v306, 64
    %v309 = vpop.permute.xlu0 %308
    %v311 = vadd.f32 %v280, %v309
    %v312 = vtanh.pop %v311
    %v313 = vsub.f32 1.0, %v301
    %315 = vrot.lane.b32.xlu0 %v312, 96
    %v316 = vpop.permute.xlu0 %315
    %v318 = vmul.f32 %v313, %v316
    %v319 = vmul.f32 %v301, 0.0
    %v320 = vadd.f32 %v318, %v319
    %v321 = vpack.c.bf16 %v235, %v235
    %323 = vrot.lane.b32.xlu0 %v321, 96
    %v324 = vpop.permute.xlu0 %323
    %v326 = vsel %vm121, %v324, 0
    %328 = vmatpush.bf16.msra.mxu0 0
    %329 = vmatpush.bf16.msra.mxu0 0
    %330 = vmatpush.bf16.msra.mxu0 0
    %331 = vmatpush.bf16.msra.mxu0 0
    %332 = vmatpush.bf16.msra.mxu0 0
    %333 = vmatpush.bf16.msra.mxu0 0
    %334 = vmatpush.bf16.msra.mxu0 %v118
    %335 = vmatpush.bf16.msra.mxu0 %v117
    %336 = vmatmul.bf16.gmra.mxu0 %v326
    %v337 = vpop.f32.mrf.mxu0
    %v338 = vadd.f32 0.0, %v337
    %v339 = vpop.f32.mrf.mxu0
    %340 = vdwg.mxu0
    %v341 = vadd.f32 %v94, %v338
    %v342 = vsub.f32 0.0, %v341
    %v343 = vmul.f32 %v342, 1.442695
    %v344 = vpow.pop %v343
    %v345 = vadd.f32 %v344, 1.0
    %v346 = vrcp.pop %v345
    %v347 = vmul.f32 %v345, %v346
    %v348 = vsub.f32 1.0, %v347
    %v349 = vmul.f32 %v346, %v348
    %v350 = vadd.f32 %v346, %v349
    %vm351 = vweird.f32 %v345
    %vm352 = vweird.f32 %v346
    %vm353 = vmor %vm351, %vm352
    %v354 = vsel %vm353, %v346, %v350
    %v355 = vand.u32 2147483647, %v345
    %vm356 = vcmp.eq.f32.partialorder %v355, 8.507059e+37
    %v357 = vand.u32 %v345, 2147483648
    %v358 = vor.u32 1.1754944e-38, %v357
    %v359 = vsel %vm356, %v358, %v354
    %v360 = vmul.f32 1.0, %v359
    %362 = vrot.lane.b32.xlu0 %v341, 32
    %v363 = vpop.permute.xlu0 %362
    %v365 = vmul.f32 %v360, %v363
    %367 = vrot.lane.b32.xlu0 %v365, 64
    %v368 = vpop.permute.xlu0 %367
    %v370 = vadd.f32 %v341, %v368
    %v371 = vtanh.pop %v370
    %v372 = vsub.f32 1.0, %v360
    %374 = vrot.lane.b32.xlu0 %v371, 96
    %v375 = vpop.permute.xlu0 %374
    %v377 = vmul.f32 %v372, %v375
    %v378 = vmul.f32 %v360, %v235
    %v379 = vadd.f32 %v377, %v378
    %381 = vrot.lane.b32.xlu0 %v235, 96
    %v382 = vpop.permute.xlu0 %381
    %v384 = vsel %vm121, %v382, %v320
    %v385 = vpack.c.bf16 %v384, %v384
    %v387 = vsel %vm266, %v385, 0
    %389 = vmatpush.bf16.msra.mxu0 0
    %390 = vmatpush.bf16.msra.mxu0 0
    %391 = vmatpush.bf16.msra.mxu0 0
    %392 = vmatpush.bf16.msra.mxu0 0
    %393 = vmatpush.bf16.msra.mxu0 %v261
    %394 = vmatpush.bf16.msra.mxu0 %v260
    %395 = vmatpush.bf16.msra.mxu0 %v259
    %396 = vmatpush.bf16.msra.mxu0 %v258
    %397 = vmatmul.bf16.gmra.mxu0 %v387
    %v398 = vpop.f32.mrf.mxu0
    %v399 = vadd.f32 %v108, %v398
    %v400 = vpop.f32.mrf.mxu0
    %401 = vdwg.mxu0
    %v402 = vsub.f32 0.0, %v399
    %v403 = vmul.f32 %v402, 1.442695
    %v404 = vpow.pop %v403
    %v405 = vadd.f32 %v404, 1.0
    %v406 = vrcp.pop %v405
    %v407 = vmul.f32 %v405, %v406
    %v408 = vsub.f32 1.0, %v407
    %v409 = vmul.f32 %v406, %v408
    %v410 = vadd.f32 %v406, %v409
    %vm411 = vweird.f32 %v405
    %vm412 = vweird.f32 %v406
    %vm413 = vmor %vm411, %vm412
    %v414 = vsel %vm413, %v406, %v410
    %v415 = vand.u32 2147483647, %v405
    %vm416 = vcmp.eq.f32.partialorder %v415, 8.507059e+37
    %v417 = vand.u32 %v405, 2147483648
    %v418 = vor.u32 1.1754944e-38, %v417
    %v419 = vsel %vm416, %v418, %v414
    %v420 = vmul.f32 1.0, %v419
    %422 = vrot.lane.b32.xlu0 %v399, 32
    %v423 = vpop.permute.xlu0 %422
    %v425 = vmul.f32 %v420, %v423
    %427 = vrot.lane.b32.xlu0 %v425, 64
    %v428 = vpop.permute.xlu0 %427
    %v430 = vadd.f32 %v399, %v428
    %v431 = vtanh.pop %v430
    %v432 = vsub.f32 1.0, %v420
    %434 = vrot.lane.b32.xlu0 %v431, 96
    %v435 = vpop.permute.xlu0 %434
    %v437 = vmul.f32 %v432, %v435
    %v438 = vmul.f32 %v420, %v320
    %v439 = vadd.f32 %v437, %v438
    %v440 = vpack.c.bf16 %v379, %v379
    %442 = vrot.lane.b32.xlu0 %v440, 96
    %v443 = vpop.permute.xlu0 %442
    %v445 = vsel %vm121, %v443, 0
    %447 = vmatpush.bf16.msra.mxu0 0
    %448 = vmatpush.bf16.msra.mxu0 0
    %449 = vmatpush.bf16.msra.mxu0 0
    %450 = vmatpush.bf16.msra.mxu0 0
    %451 = vmatpush.bf16.msra.mxu0 0
    %452 = vmatpush.bf16.msra.mxu0 0
    %453 = vmatpush.bf16.msra.mxu0 %v118
    %454 = vmatpush.bf16.msra.mxu0 %v117
    %455 = vmatmul.bf16.gmra.mxu0 %v445
    %v456 = vpop.f32.mrf.mxu0
    %v457 = vadd.f32 0.0, %v456
    %v458 = vpop.f32.mrf.mxu0
    %459 = vdwg.mxu0
    %v460 = vadd.f32 %v96, %v457
    %v461 = vsub.f32 0.0, %v460
    %v462 = vmul.f32 %v461, 1.442695
    %v463 = vpow.pop %v462
    %v464 = vadd.f32 %v463, 1.0
    %v465 = vrcp.pop %v464
    %v466 = vmul.f32 %v464, %v465
    %v467 = vsub.f32 1.0, %v466
    %v468 = vmul.f32 %v465, %v467
    %v469 = vadd.f32 %v465, %v468
    %vm470 = vweird.f32 %v464
    %vm471 = vweird.f32 %v465
    %vm472 = vmor %vm470, %vm471
    %v473 = vsel %vm472, %v465, %v469
    %v474 = vand.u32 2147483647, %v464
    %vm475 = vcmp.eq.f32.partialorder %v474, 8.507059e+37
    %v476 = vand.u32 %v464, 2147483648
    %v477 = vor.u32 1.1754944e-38, %v476
    %v478 = vsel %vm475, %v477, %v473
    %v479 = vmul.f32 1.0, %v478
    %481 = vrot.lane.b32.xlu0 %v460, 32
    %v482 = vpop.permute.xlu0 %481
    %v484 = vmul.f32 %v479, %v482
    %486 = vrot.lane.b32.xlu0 %v484, 64
    %v487 = vpop.permute.xlu0 %486
    %v489 = vadd.f32 %v460, %v487
    %v490 = vtanh.pop %v489
    %v491 = vsub.f32 1.0, %v479
    %493 = vrot.lane.b32.xlu0 %v490, 96
    %v494 = vpop.permute.xlu0 %493
    %v496 = vmul.f32 %v491, %v494
    %v497 = vmul.f32 %v479, %v379
    %v498 = vadd.f32 %v496, %v497
    %500 = vrot.lane.b32.xlu0 %v379, 96
    %v501 = vpop.permute.xlu0 %500
    %v503 = vsel %vm121, %v501, %v439
    %v504 = vpack.c.bf16 %v503, %v503
    %v506 = vsel %vm266, %v504, 0
    %508 = vmatpush.bf16.msra.mxu0 0
    %509 = vmatpush.bf16.msra.mxu0 0
    %510 = vmatpush.bf16.msra.mxu0 0
    %511 = vmatpush.bf16.msra.mxu0 0
    %512 = vmatpush.bf16.msra.mxu0 %v261
    %513 = vmatpush.bf16.msra.mxu0 %v260
    %514 = vmatpush.bf16.msra.mxu0 %v259
    %515 = vmatpush.bf16.msra.mxu0 %v258
    %516 = vmatmul.bf16.gmra.mxu0 %v506
    %v517 = vpop.f32.mrf.mxu0
    %v518 = vadd.f32 %v108, %v517
    %v519 = vpop.f32.mrf.mxu0
    %520 = vdwg.mxu0
    %v521 = vsub.f32 0.0, %v518
    %v522 = vmul.f32 %v521, 1.442695
    %v523 = vpow.pop %v522
    %v524 = vadd.f32 %v523, 1.0
    %v525 = vrcp.pop %v524
    %v526 = vmul.f32 %v524, %v525
    %v527 = vsub.f32 1.0, %v526
    %v528 = vmul.f32 %v525, %v527
    %v529 = vadd.f32 %v525, %v528
    %vm530 = vweird.f32 %v524
    %vm531 = vweird.f32 %v525
    %vm532 = vmor %vm530, %vm531
    %v533 = vsel %vm532, %v525, %v529
    %v534 = vand.u32 2147483647, %v524
    %vm535 = vcmp.eq.f32.partialorder %v534, 8.507059e+37
    %v536 = vand.u32 %v524, 2147483648
    %v537 = vor.u32 1.1754944e-38, %v536
    %v538 = vsel %vm535, %v537, %v533
    %v539 = vmul.f32 1.0, %v538
    %541 = vrot.lane.b32.xlu0 %v518, 32
    %v542 = vpop.permute.xlu0 %541
    %v544 = vmul.f32 %v539, %v542
    %546 = vrot.lane.b32.xlu0 %v544, 64
    %v547 = vpop.permute.xlu0 %546
    %v549 = vadd.f32 %v518, %v547
    %v550 = vtanh.pop %v549
    %v551 = vsub.f32 1.0, %v539
    %553 = vrot.lane.b32.xlu0 %v550, 96
    %v554 = vpop.permute.xlu0 %553
    %v556 = vmul.f32 %v551, %v554
    %v557 = vmul.f32 %v539, %v439
    %v558 = vadd.f32 %v556, %v557
    %v559 = vpack.c.bf16 %v498, %v498
    %561 = vrot.lane.b32.xlu0 %v559, 96
    %v562 = vpop.permute.xlu0 %561
    %v564 = vsel %vm121, %v562, 0
    %566 = vmatpush.bf16.msra.mxu0 0
    %567 = vmatpush.bf16.msra.mxu0 0
    %568 = vmatpush.bf16.msra.mxu0 0
    %569 = vmatpush.bf16.msra.mxu0 0
    %570 = vmatpush.bf16.msra.mxu0 0
    %571 = vmatpush.bf16.msra.mxu0 0
    %572 = vmatpush.bf16.msra.mxu0 %v118
    %573 = vmatpush.bf16.msra.mxu0 %v117
    %574 = vmatmul.bf16.gmra.mxu0 %v564
    %v575 = vpop.f32.mrf.mxu0
    %v576 = vadd.f32 0.0, %v575
    %v577 = vpop.f32.mrf.mxu0
    %578 = vdwg.mxu0
    %v579 = vadd.f32 %v99, %v576
    %v580 = vsub.f32 0.0, %v579
    %v581 = vmul.f32 %v580, 1.442695
    %v582 = vpow.pop %v581
    %v583 = vadd.f32 %v582, 1.0
    %v584 = vrcp.pop %v583
    %v585 = vmul.f32 %v583, %v584
    %v586 = vsub.f32 1.0, %v585
    %v587 = vmul.f32 %v584, %v586
    %v588 = vadd.f32 %v584, %v587
    %vm589 = vweird.f32 %v583
    %vm590 = vweird.f32 %v584
    %vm591 = vmor %vm589, %vm590
    %v592 = vsel %vm591, %v584, %v588
    %v593 = vand.u32 2147483647, %v583
    %vm594 = vcmp.eq.f32.partialorder %v593, 8.507059e+37
    %v595 = vand.u32 %v583, 2147483648
    %v596 = vor.u32 1.1754944e-38, %v595
    %v597 = vsel %vm594, %v596, %v592
    %v598 = vmul.f32 1.0, %v597
    %600 = vrot.lane.b32.xlu0 %v579, 32
    %v601 = vpop.permute.xlu0 %600
    %v603 = vmul.f32 %v598, %v601
    %605 = vrot.lane.b32.xlu0 %v603, 64
    %v606 = vpop.permute.xlu0 %605
    %v608 = vadd.f32 %v579, %v606
    %v609 = vtanh.pop %v608
    %v610 = vsub.f32 1.0, %v598
    %612 = vrot.lane.b32.xlu0 %v609, 96
    %v613 = vpop.permute.xlu0 %612
    %v615 = vmul.f32 %v610, %v613
    %v616 = vmul.f32 %v598, %v498
    %v617 = vadd.f32 %v615, %v616
    %619 = vrot.lane.b32.xlu0 %v498, 96
    %v620 = vpop.permute.xlu0 %619
    %v622 = vsel %vm121, %v620, %v558
    %v623 = vpack.c.bf16 %v622, %v622
    %v625 = vsel %vm266, %v623, 0
    %627 = vmatpush.bf16.msra.mxu0 0
    %628 = vmatpush.bf16.msra.mxu0 0
    %629 = vmatpush.bf16.msra.mxu0 0
    %630 = vmatpush.bf16.msra.mxu0 0
    %631 = vmatpush.bf16.msra.mxu0 %v261
    %632 = vmatpush.bf16.msra.mxu0 %v260
    %633 = vmatpush.bf16.msra.mxu0 %v259
    %634 = vmatpush.bf16.msra.mxu0 %v258
    %635 = vmatmul.bf16.gmra.mxu0 %v625
    %v636 = vpop.f32.mrf.mxu0
    %v637 = vadd.f32 %v108, %v636
    %v638 = vpop.f32.mrf.mxu0
    %639 = vdwg.mxu0
    %v640 = vsub.f32 0.0, %v637
    %v641 = vmul.f32 %v640, 1.442695
    %v642 = vpow.pop %v641
    %v643 = vadd.f32 %v642, 1.0
    %v644 = vrcp.pop %v643
    %v645 = vmul.f32 %v643, %v644
    %v646 = vsub.f32 1.0, %v645
    %v647 = vmul.f32 %v644, %v646
    %v648 = vadd.f32 %v644, %v647
    %vm649 = vweird.f32 %v643
    %vm650 = vweird.f32 %v644
    %vm651 = vmor %vm649, %vm650
    %v652 = vsel %vm651, %v644, %v648
    %v653 = vand.u32 2147483647, %v643
    %vm654 = vcmp.eq.f32.partialorder %v653, 8.507059e+37
    %v655 = vand.u32 %v643, 2147483648
    %v656 = vor.u32 1.1754944e-38, %v655
    %v657 = vsel %vm654, %v656, %v652
    %v658 = vmul.f32 1.0, %v657
    %660 = vrot.lane.b32.xlu0 %v637, 32
    %v661 = vpop.permute.xlu0 %660
    %v663 = vmul.f32 %v658, %v661
    %665 = vrot.lane.b32.xlu0 %v663, 64
    %v666 = vpop.permute.xlu0 %665
    %v668 = vadd.f32 %v637, %v666
    %v669 = vtanh.pop %v668
    %v670 = vsub.f32 1.0, %v658
    %672 = vrot.lane.b32.xlu0 %v669, 96
    %v673 = vpop.permute.xlu0 %672
    %v675 = vmul.f32 %v670, %v673
    %v676 = vmul.f32 %v658, %v558
    %v677 = vadd.f32 %v675, %v676
    %v678 = vpack.c.bf16 %v617, %v617
    %680 = vrot.lane.b32.xlu0 %v678, 96
    %v681 = vpop.permute.xlu0 %680
    %v683 = vsel %vm121, %v681, 0
    %685 = vmatpush.bf16.msra.mxu0 0
    %686 = vmatpush.bf16.msra.mxu0 0
    %687 = vmatpush.bf16.msra.mxu0 0
    %688 = vmatpush.bf16.msra.mxu0 0
    %689 = vmatpush.bf16.msra.mxu0 0
    %690 = vmatpush.bf16.msra.mxu0 0
    %691 = vmatpush.bf16.msra.mxu0 %v118
    %692 = vmatpush.bf16.msra.mxu0 %v117
    %693 = vmatmul.bf16.gmra.mxu0 %v683
    %v694 = vpop.f32.mrf.mxu0
    %v695 = vadd.f32 0.0, %v694
    %v696 = vpop.f32.mrf.mxu0
    %697 = vdwg.mxu0
    %v698 = vadd.f32 %v101, %v695
    %v699 = vsub.f32 0.0, %v698
    %v700 = vmul.f32 %v699, 1.442695
    %v701 = vpow.pop %v700
    %v702 = vadd.f32 %v701, 1.0
    %v703 = vrcp.pop %v702
    %v704 = vmul.f32 %v702, %v703
    %v705 = vsub.f32 1.0, %v704
    %v706 = vmul.f32 %v703, %v705
    %v707 = vadd.f32 %v703, %v706
    %vm708 = vweird.f32 %v702
    %vm709 = vweird.f32 %v703
    %vm710 = vmor %vm708, %vm709
    %v711 = vsel %vm710, %v703, %v707
    %v712 = vand.u32 2147483647, %v702
    %vm713 = vcmp.eq.f32.partialorder %v712, 8.507059e+37
    %v714 = vand.u32 %v702, 2147483648
    %v715 = vor.u32 1.1754944e-38, %v714
    %v716 = vsel %vm713, %v715, %v711
    %v717 = vmul.f32 1.0, %v716
    %719 = vrot.lane.b32.xlu0 %v698, 32
    %v720 = vpop.permute.xlu0 %719
    %v722 = vmul.f32 %v717, %v720
    %724 = vrot.lane.b32.xlu0 %v722, 64
    %v725 = vpop.permute.xlu0 %724
    %v727 = vadd.f32 %v698, %v725
    %v728 = vtanh.pop %v727
    %v729 = vsub.f32 1.0, %v717
    %731 = vrot.lane.b32.xlu0 %v728, 96
    %v732 = vpop.permute.xlu0 %731
    %v734 = vmul.f32 %v729, %v732
    %v735 = vmul.f32 %v717, %v617
    %v736 = vadd.f32 %v734, %v735
    %738 = vrot.lane.b32.xlu0 %v617, 96
    %v739 = vpop.permute.xlu0 %738
    %v741 = vsel %vm121, %v739, %v677
    %v742 = vpack.c.bf16 %v741, %v741
    %v744 = vsel %vm266, %v742, 0
    %746 = vmatpush.bf16.msra.mxu0 0
    %747 = vmatpush.bf16.msra.mxu0 0
    %748 = vmatpush.bf16.msra.mxu0 0
    %749 = vmatpush.bf16.msra.mxu0 0
    %750 = vmatpush.bf16.msra.mxu0 %v261
    %751 = vmatpush.bf16.msra.mxu0 %v260
    %752 = vmatpush.bf16.msra.mxu0 %v259
    %753 = vmatpush.bf16.msra.mxu0 %v258
    %754 = vmatmul.bf16.gmra.mxu0 %v744
    %v755 = vpop.f32.mrf.mxu0
    %v756 = vadd.f32 %v108, %v755
    %v757 = vpop.f32.mrf.mxu0
    %758 = vdwg.mxu0
    %v759 = vsub.f32 0.0, %v756
    %v760 = vmul.f32 %v759, 1.442695
    %v761 = vpow.pop %v760
    %v762 = vadd.f32 %v761, 1.0
    %v763 = vrcp.pop %v762
    %v764 = vmul.f32 %v762, %v763
    %v765 = vsub.f32 1.0, %v764
    %v766 = vmul.f32 %v763, %v765
    %v767 = vadd.f32 %v763, %v766
    %vm768 = vweird.f32 %v762
    %vm769 = vweird.f32 %v763
    %vm770 = vmor %vm768, %vm769
    %v771 = vsel %vm770, %v763, %v767
    %v772 = vand.u32 2147483647, %v762
    %vm773 = vcmp.eq.f32.partialorder %v772, 8.507059e+37
    %v774 = vand.u32 %v762, 2147483648
    %v775 = vor.u32 1.1754944e-38, %v774
    %v776 = vsel %vm773, %v775, %v771
    %v777 = vmul.f32 1.0, %v776
    %779 = vrot.lane.b32.xlu0 %v756, 32
    %v780 = vpop.permute.xlu0 %779
    %v782 = vmul.f32 %v777, %v780
    %784 = vrot.lane.b32.xlu0 %v782, 64
    %v785 = vpop.permute.xlu0 %784
    %v787 = vadd.f32 %v756, %v785
    %v788 = vtanh.pop %v787
    %v789 = vsub.f32 1.0, %v777
    %791 = vrot.lane.b32.xlu0 %v788, 96
    %v792 = vpop.permute.xlu0 %791
    %v794 = vmul.f32 %v789, %v792
    %v795 = vmul.f32 %v777, %v677
    %v796 = vadd.f32 %v794, %v795
    %v797 = vpack.c.bf16 %v736, %v736
    %799 = vrot.lane.b32.xlu0 %v797, 96
    %v800 = vpop.permute.xlu0 %799
    %v802 = vsel %vm121, %v800, 0
    %804 = vmatpush.bf16.msra.mxu0 0
    %805 = vmatpush.bf16.msra.mxu0 0
    %806 = vmatpush.bf16.msra.mxu0 0
    %807 = vmatpush.bf16.msra.mxu0 0
    %808 = vmatpush.bf16.msra.mxu0 0
    %809 = vmatpush.bf16.msra.mxu0 0
    %810 = vmatpush.bf16.msra.mxu0 %v118
    %811 = vmatpush.bf16.msra.mxu0 %v117
    %812 = vmatmul.bf16.gmra.mxu0 %v802
    %v813 = vpop.f32.mrf.mxu0
    %v814 = vadd.f32 0.0, %v813
    %v815 = vpop.f32.mrf.mxu0
    %816 = vdwg.mxu0
    %v817 = vadd.f32 %v104, %v814
    %v818 = vsub.f32 0.0, %v817
    %v819 = vmul.f32 %v818, 1.442695
    %v820 = vpow.pop %v819
    %v821 = vadd.f32 %v820, 1.0
    %v822 = vrcp.pop %v821
    %v823 = vmul.f32 %v821, %v822
    %v824 = vsub.f32 1.0, %v823
    %v825 = vmul.f32 %v822, %v824
    %v826 = vadd.f32 %v822, %v825
    %vm827 = vweird.f32 %v821
    %vm828 = vweird.f32 %v822
    %vm829 = vmor %vm827, %vm828
    %v830 = vsel %vm829, %v822, %v826
    %v831 = vand.u32 2147483647, %v821
    %vm832 = vcmp.eq.f32.partialorder %v831, 8.507059e+37
    %v833 = vand.u32 %v821, 2147483648
    %v834 = vor.u32 1.1754944e-38, %v833
    %v835 = vsel %vm832, %v834, %v830
    %v836 = vmul.f32 1.0, %v835
    %838 = vrot.lane.b32.xlu0 %v817, 32
    %v839 = vpop.permute.xlu0 %838
    %v841 = vmul.f32 %v836, %v839
    %843 = vrot.lane.b32.xlu0 %v841, 64
    %v844 = vpop.permute.xlu0 %843
    %v846 = vadd.f32 %v817, %v844
    %v847 = vtanh.pop %v846
    %v848 = vsub.f32 1.0, %v836
    %850 = vrot.lane.b32.xlu0 %v847, 96
    %v851 = vpop.permute.xlu0 %850
    %v853 = vmul.f32 %v848, %v851
    %v854 = vmul.f32 %v836, %v736
    %v855 = vadd.f32 %v853, %v854
    %857 = vrot.lane.b32.xlu0 %v736, 96
    %v858 = vpop.permute.xlu0 %857
    %v860 = vsel %vm121, %v858, %v796
    %v861 = vpack.c.bf16 %v860, %v860
    %v863 = vsel %vm266, %v861, 0
    %865 = vmatpush.bf16.msra.mxu0 0
    %866 = vmatpush.bf16.msra.mxu0 0
    %867 = vmatpush.bf16.msra.mxu0 0
    %868 = vmatpush.bf16.msra.mxu0 0
    %869 = vmatpush.bf16.msra.mxu0 %v261
    %870 = vmatpush.bf16.msra.mxu0 %v260
    %871 = vmatpush.bf16.msra.mxu0 %v259
    %872 = vmatpush.bf16.msra.mxu0 %v258
    %873 = vmatmul.bf16.gmra.mxu0 %v863
    %v874 = vpop.f32.mrf.mxu0
    %v875 = vadd.f32 %v108, %v874
    %v876 = vpop.f32.mrf.mxu0
    %877 = vdwg.mxu0
    %v878 = vsub.f32 0.0, %v875
    %v879 = vmul.f32 %v878, 1.442695
    %v880 = vpow.pop %v879
    %v881 = vadd.f32 %v880, 1.0
    %v882 = vrcp.pop %v881
    %v883 = vmul.f32 %v881, %v882
    %v884 = vsub.f32 1.0, %v883
    %v885 = vmul.f32 %v882, %v884
    %v886 = vadd.f32 %v882, %v885
    %vm887 = vweird.f32 %v881
    %vm888 = vweird.f32 %v882
    %vm889 = vmor %vm887, %vm888
    %v890 = vsel %vm889, %v882, %v886
    %v891 = vand.u32 2147483647, %v881
    %vm892 = vcmp.eq.f32.partialorder %v891, 8.507059e+37
    %v893 = vand.u32 %v881, 2147483648
    %v894 = vor.u32 1.1754944e-38, %v893
    %v895 = vsel %vm892, %v894, %v890
    %v896 = vmul.f32 1.0, %v895
    %898 = vrot.lane.b32.xlu0 %v875, 32
    %v899 = vpop.permute.xlu0 %898
    %v901 = vmul.f32 %v896, %v899
    %903 = vrot.lane.b32.xlu0 %v901, 64
    %v904 = vpop.permute.xlu0 %903
    %v906 = vadd.f32 %v875, %v904
    %v907 = vtanh.pop %v906
    %v908 = vsub.f32 1.0, %v896
    %910 = vrot.lane.b32.xlu0 %v907, 96
    %v911 = vpop.permute.xlu0 %910
    %v913 = vmul.f32 %v908, %v911
    %v914 = vmul.f32 %v896, %v796
    %v915 = vadd.f32 %v913, %v914
    %v916 = vpack.c.bf16 %v855, %v855
    %918 = vrot.lane.b32.xlu0 %v916, 96
    %v919 = vpop.permute.xlu0 %918
    %v921 = vsel %vm121, %v919, 0
    %923 = vmatpush.bf16.msra.mxu0 0
    %924 = vmatpush.bf16.msra.mxu0 0
    %925 = vmatpush.bf16.msra.mxu0 0
    %926 = vmatpush.bf16.msra.mxu0 0
    %927 = vmatpush.bf16.msra.mxu0 0
    %928 = vmatpush.bf16.msra.mxu0 0
    %929 = vmatpush.bf16.msra.mxu0 %v118
    %930 = vmatpush.bf16.msra.mxu0 %v117
    %931 = vmatmul.bf16.gmra.mxu0 %v921
    %v932 = vpop.f32.mrf.mxu0
    %v933 = vadd.f32 0.0, %v932
    %v934 = vpop.f32.mrf.mxu0
    %935 = vdwg.mxu0
    %v936 = vadd.f32 %v106, %v933
    %v937 = vsub.f32 0.0, %v936
    %v938 = vmul.f32 %v937, 1.442695
    %v939 = vpow.pop %v938
    %v940 = vadd.f32 %v939, 1.0
    %v941 = vrcp.pop %v940
    %v942 = vmul.f32 %v940, %v941
    %v943 = vsub.f32 1.0, %v942
    %v944 = vmul.f32 %v941, %v943
    %v945 = vadd.f32 %v941, %v944
    %vm946 = vweird.f32 %v940
    %vm947 = vweird.f32 %v941
    %vm948 = vmor %vm946, %vm947
    %v949 = vsel %vm948, %v941, %v945
    %v950 = vand.u32 2147483647, %v940
    %vm951 = vcmp.eq.f32.partialorder %v950, 8.507059e+37
    %v952 = vand.u32 %v940, 2147483648
    %v953 = vor.u32 1.1754944e-38, %v952
    %v954 = vsel %vm951, %v953, %v949
    %v955 = vmul.f32 1.0, %v954
    %957 = vrot.lane.b32.xlu0 %v936, 32
    %v958 = vpop.permute.xlu0 %957
    %v960 = vmul.f32 %v955, %v958
    %962 = vrot.lane.b32.xlu0 %v960, 64
    %v963 = vpop.permute.xlu0 %962
    %v965 = vadd.f32 %v936, %v963
    %v966 = vtanh.pop %v965
    %v967 = vsub.f32 1.0, %v955
    %969 = vrot.lane.b32.xlu0 %v966, 96
    %v970 = vpop.permute.xlu0 %969
    %v972 = vmul.f32 %v967, %v970
    %v973 = vmul.f32 %v955, %v855
    %v974 = vadd.f32 %v972, %v973
    %976 = vrot.lane.b32.xlu0 %v855, 96
    %v977 = vpop.permute.xlu0 %976
    %v979 = vsel %vm121, %v977, %v915
    %v980 = vpack.c.bf16 %v979, %v979
    %v982 = vsel %vm266, %v980, 0
    %984 = vmatpush.bf16.msra.mxu0 0
    %985 = vmatpush.bf16.msra.mxu0 0
    %986 = vmatpush.bf16.msra.mxu0 0
    %987 = vmatpush.bf16.msra.mxu0 0
    %988 = vmatpush.bf16.msra.mxu0 %v261
    %989 = vmatpush.bf16.msra.mxu0 %v260
    %990 = vmatpush.bf16.msra.mxu0 %v259
    %991 = vmatpush.bf16.msra.mxu0 %v258
    %992 = vmatmul.bf16.gmra.mxu0 %v982
    %v993 = vpop.f32.mrf.mxu0
    %v994 = vadd.f32 %v108, %v993
    %v995 = vpop.f32.mrf.mxu0
    %996 = vdwg.mxu0
    %v997 = vsub.f32 0.0, %v994
    %v998 = vmul.f32 %v997, 1.442695
    %v999 = vpow.pop %v998
    %v1000 = vadd.f32 %v999, 1.0
    %v1001 = vrcp.pop %v1000
    %v1002 = vmul.f32 %v1000, %v1001
    %v1003 = vsub.f32 1.0, %v1002
    %v1004 = vmul.f32 %v1001, %v1003
    %v1005 = vadd.f32 %v1001, %v1004
    %vm1006 = vweird.f32 %v1000
    %vm1007 = vweird.f32 %v1001
    %vm1008 = vmor %vm1006, %vm1007
    %v1009 = vsel %vm1008, %v1001, %v1005
    %v1010 = vand.u32 2147483647, %v1000
    %vm1011 = vcmp.eq.f32.partialorder %v1010, 8.507059e+37
    %v1012 = vand.u32 %v1000, 2147483648
    %v1013 = vor.u32 1.1754944e-38, %v1012
    %v1014 = vsel %vm1011, %v1013, %v1009
    %v1015 = vmul.f32 1.0, %v1014
    %1017 = vrot.lane.b32.xlu0 %v994, 32
    %v1018 = vpop.permute.xlu0 %1017
    %v1020 = vmul.f32 %v1015, %v1018
    %1022 = vrot.lane.b32.xlu0 %v1020, 64
    %v1023 = vpop.permute.xlu0 %1022
    %v1025 = vadd.f32 %v994, %v1023
    %v1026 = vtanh.pop %v1025
    %v1027 = vsub.f32 1.0, %v1015
    %1029 = vrot.lane.b32.xlu0 %v1026, 96
    %v1030 = vpop.permute.xlu0 %1029
    %v1032 = vmul.f32 %v1027, %v1030
    %v1033 = vmul.f32 %v1015, %v915
    %v1034 = vadd.f32 %v1032, %v1033
    %1036 = vrot.lane.b32.xlu0 %v974, 96
    %v1037 = vpop.permute.xlu0 %1036
    %v1039 = vsel %vm121, %v1037, %v1034
    %v1040 = vpack.c.bf16 %v1039, %v1039
    %v1042 = vsel %vm266, %v1040, 0
    %1044 = vmatpush.bf16.msra.mxu0 0
    %1045 = vmatpush.bf16.msra.mxu0 0
    %1046 = vmatpush.bf16.msra.mxu0 0
    %1047 = vmatpush.bf16.msra.mxu0 0
    %1048 = vmatpush.bf16.msra.mxu0 %v261
    %1049 = vmatpush.bf16.msra.mxu0 %v260
    %1050 = vmatpush.bf16.msra.mxu0 %v259
    %1051 = vmatpush.bf16.msra.mxu0 %v258
    %1052 = vmatmul.bf16.gmra.mxu0 %v1042
    %v1053 = vpop.f32.mrf.mxu0
    %v1054 = vadd.f32 %v108, %v1053
    %v1055 = vpop.f32.mrf.mxu0
    %1056 = vdwg.mxu0
    %v1057 = vsub.f32 0.0, %v1054
    %v1058 = vmul.f32 %v1057, 1.442695
    %v1059 = vpow.pop %v1058
    %v1060 = vadd.f32 %v1059, 1.0
    %v1061 = vrcp.pop %v1060
    %v1062 = vmul.f32 %v1060, %v1061
    %v1063 = vsub.f32 1.0, %v1062
    %v1064 = vmul.f32 %v1061, %v1063
    %v1065 = vadd.f32 %v1061, %v1064
    %vm1066 = vweird.f32 %v1060
    %vm1067 = vweird.f32 %v1061
    %vm1068 = vmor %vm1066, %vm1067
    %v1069 = vsel %vm1068, %v1061, %v1065
    %v1070 = vand.u32 2147483647, %v1060
    %vm1071 = vcmp.eq.f32.partialorder %v1070, 8.507059e+37
    %v1072 = vand.u32 %v1060, 2147483648
    %v1073 = vor.u32 1.1754944e-38, %v1072
    %v1074 = vsel %vm1071, %v1073, %v1069
    %v1075 = vmul.f32 1.0, %v1074
    %1077 = vrot.lane.b32.xlu0 %v1054, 32
    %v1078 = vpop.permute.xlu0 %1077
    %v1080 = vmul.f32 %v1075, %v1078
    %1082 = vrot.lane.b32.xlu0 %v1080, 64
    %v1083 = vpop.permute.xlu0 %1082
    %v1085 = vadd.f32 %v1054, %v1083
    %v1086 = vtanh.pop %v1085
    %v1087 = vsub.f32 1.0, %v1075
    %1089 = vrot.lane.b32.xlu0 %v1086, 96
    %v1090 = vpop.permute.xlu0 %1089
    %v1092 = vmul.f32 %v1087, %v1090
    %v1093 = vmul.f32 %v1075, %v1034
    %v1094 = vadd.f32 %v1092, %v1093
    %v1095 = vld [vmem:[%s1] sm:$0xff]
    %v1096 = vpack.c.bf16 %v1095, %v1095
    %v1097 = vld [vmem:[#allocation2 + $0x38] sm:$0xf]
    %v1098 = vld [vmem:[#allocation2 + $0x90] sm:$0x2]
    %v1099 = vunpack.c.l.bf16 %v1098
    %v1100 = vperm.slane %v1099, 2
    %vm1101 = vcmask 64512
    %v1103 = vsel %vm1101, %v1096, 0
    %vm1105 = vcmask 1043456
    %v1107 = vsel %vm1105, %v1097, 0
    %1109 = vmatpush.bf16.msra.mxu0 0
    %1110 = vmatpush.bf16.msra.mxu0 0
    %1111 = vmatpush.bf16.msra.mxu0 0
    %1112 = vmatpush.bf16.msra.mxu0 0
    %1113 = vmatpush.bf16.msra.mxu0 0
    %1114 = vmatpush.bf16.msra.mxu0 0
    %1115 = vmatpush.bf16.msra.mxu0 0
    %1116 = vmatpush.bf16.msra.mxu0 %v1107
    %1117 = vmatmul.bf16.gmra.mxu0 %v1103
    %v1118 = vpop.f32.mrf.mxu0
    %v1119 = vadd.f32 %v1100, %v1118
    %v1120 = vpop.f32.mrf.mxu0
    %1121 = vdwg.mxu0
    %vm1122 = vcmp.gt.f32.partialorder %v1119, 0.0
    %v1123 = vmul.f32 %v1119, 0.01
    %v1124 = vsel %vm1122, %v1119, %v1123
    %v1125 = vperm.slane %v1099, 3
    %v1126 = vmul.f32 %v1124, %v1125
    %v1127 = vld [vmem:[#allocation2 + $0x90] sm:$0x4]
    %v1128 = vunpack.c.l.bf16 %v1127
    %v1129 = vperm.slane %v1128, 4
    %v1130 = vadd.f32 %v1126, %v1129
    %v1131 = vpack.c.bf16 %v1130, %v1130
    %v1132 = vld [vmem:[#allocation2 + $0x40] sm:$0xf]
    %v1133 = vld [vmem:[#allocation2 + $0x44] sm:$0xf]
    %v1134 = vld [vmem:[#allocation2 + $0x48] sm:$0xf]
    %v1135 = vld [vmem:[#allocation2 + $0x4c] sm:$0xf]
    %v1136 = vperm.slane %v1128, 5
    %v1141 = vunpack.c.l.b16 %v1132
    %v1142 = vunpack.c.l.b16 %v1133
    %v1143 = vunpack.c.l.b16 %v1134
    %v1144 = vunpack.c.l.b16 %v1135
    %v1145 = vpack.c.b16 %v1142, %v1141
    %v1146 = vpack.c.b16 %v1144, %v1143
    %v1150 = vsel %vm121, %v1131, 0
    %1152 = vmatpush.bf16.msra.mxu0 0
    %1153 = vmatpush.bf16.msra.mxu0 0
    %1154 = vmatpush.bf16.msra.mxu0 0
    %1155 = vmatpush.bf16.msra.mxu0 0
    %1156 = vmatpush.bf16.msra.mxu0 0
    %1157 = vmatpush.bf16.msra.mxu0 0
    %1158 = vmatpush.bf16.msra.mxu0 %v1146
    %1159 = vmatpush.bf16.msra.mxu0 %v1145
    %1160 = vmatmul.bf16.gmra.mxu0 %v1150
    %v1161 = vpop.f32.mrf.mxu0
    %v1162 = vadd.f32 %v1136, %v1161
    %v1163 = vpop.f32.mrf.mxu0
    %1164 = vdwg.mxu0
    %v1165 = vpack.c.bf16 %v1094, %v1094
    %v1166 = vld [vmem:[#allocation2 + $0x50] sm:$0xf]
    %v1167 = vld [vmem:[#allocation2 + $0x54] sm:$0xf]
    %v1168 = vld [vmem:[#allocation2 + $0x58] sm:$0xf]
    %v1169 = vld [vmem:[#allocation2 + $0x5c] sm:$0xf]
    %v1170 = vpack.c.bf16 %v1162, %v1162
    %v1171 = vld [vmem:[#allocation2 + $0x60] sm:$0xf]
    %v1172 = vld [vmem:[#allocation2 + $0x64] sm:$0xf]
    %v1173 = vld [vmem:[#allocation2 + $0x68] sm:$0xf]
    %v1174 = vld [vmem:[#allocation2 + $0x6c] sm:$0xf]
    %v1179 = vunpack.c.l.b16 %v1171
    %v1180 = vunpack.c.l.b16 %v1172
    %v1181 = vunpack.c.l.b16 %v1173
    %v1182 = vunpack.c.l.b16 %v1174
    %v1183 = vpack.c.b16 %v1180, %v1179
    %v1184 = vpack.c.b16 %v1182, %v1181
    %v1188 = vsel %vm121, %v1170, 0
    %1190 = vmatpush.bf16.msra.mxu0 0
    %1191 = vmatpush.bf16.msra.mxu0 0
    %1192 = vmatpush.bf16.msra.mxu0 0
    %1193 = vmatpush.bf16.msra.mxu0 0
    %1194 = vmatpush.bf16.msra.mxu0 0
    %1195 = vmatpush.bf16.msra.mxu0 0
    %1196 = vmatpush.bf16.msra.mxu0 %v1184
    %1197 = vmatpush.bf16.msra.mxu0 %v1183
    %1198 = vmatmul.bf16.gmra.mxu0 %v1188
    %v1199 = vpop.f32.mrf.mxu0
    %v1200 = vadd.f32 0.0, %v1199
    %v1201 = vpop.f32.mrf.mxu0
    %1202 = vdwg.mxu0
    %1204 = vrot.lane.b32.xlu0 %v1165, 96
    %v1205 = vpop.permute.xlu0 %1204
    %v1210 = vunpack.c.l.b16 %v1166
    %v1211 = vunpack.c.l.b16 %v1167
    %v1212 = vunpack.c.l.b16 %v1168
    %v1213 = vunpack.c.l.b16 %v1169
    %v1214 = vpack.c.b16 %v1211, %v1210
    %v1215 = vpack.c.b16 %v1213, %v1212
    %v1219 = vsel %vm121, %v1205, 0
    %1221 = vmatpush.bf16.msra.mxu0 0
    %1222 = vmatpush.bf16.msra.mxu0 0
    %1223 = vmatpush.bf16.msra.mxu0 0
    %1224 = vmatpush.bf16.msra.mxu0 0
    %1225 = vmatpush.bf16.msra.mxu0 0
    %1226 = vmatpush.bf16.msra.mxu0 0
    %1227 = vmatpush.bf16.msra.mxu0 %v1215
    %1228 = vmatpush.bf16.msra.mxu0 %v1214
    %1229 = vmatmul.bf16.gmra.mxu0 %v1219
    %v1230 = vpop.f32.mrf.mxu0
    %v1231 = vadd.f32 %v1200, %v1230
    %v1232 = vpop.f32.mrf.mxu0
    %1233 = vdwg.mxu0
    %v1234 = vld [vmem:[#allocation2 + $0x90] sm:$0x8]
    %v1235 = vunpack.c.l.bf16 %v1234
    %v1236 = vperm.slane %v1235, 6
    %v1237 = vadd.f32 %v1231, %v1236
    %vm1238 = vcmp.gt.f32.partialorder %v1237, 0.0
    %v1239 = vmul.f32 %v1237, 0.01
    %v1240 = vsel %vm1238, %v1237, %v1239
    %v1241 = vpack.c.bf16 %v1240, %v1240
    %v1242 = vld [vmem:[#allocation2 + $0x70] sm:$0xf]
    %v1243 = vld [vmem:[#allocation2 + $0x74] sm:$0xf]
    %v1244 = vld [vmem:[#allocation2 + $0x78] sm:$0xf]
    %v1245 = vld [vmem:[#allocation2 + $0x7c] sm:$0xf]
    %v1246 = vperm.slane %v1235, 7
    %v1251 = vunpack.c.l.b16 %v1242
    %v1252 = vunpack.c.l.b16 %v1243
    %v1253 = vunpack.c.l.b16 %v1244
    %v1254 = vunpack.c.l.b16 %v1245
    %v1255 = vpack.c.b16 %v1252, %v1251
    %v1256 = vpack.c.b16 %v1254, %v1253
    %v1260 = vsel %vm121, %v1241, 0
    %1262 = vmatpush.bf16.msra.mxu0 0
    %1263 = vmatpush.bf16.msra.mxu0 0
    %1264 = vmatpush.bf16.msra.mxu0 0
    %1265 = vmatpush.bf16.msra.mxu0 0
    %1266 = vmatpush.bf16.msra.mxu0 0
    %1267 = vmatpush.bf16.msra.mxu0 0
    %1268 = vmatpush.bf16.msra.mxu0 %v1256
    %1269 = vmatpush.bf16.msra.mxu0 %v1255
    %1270 = vmatmul.bf16.gmra.mxu0 %v1260
    %v1271 = vpop.f32.mrf.mxu0
    %v1272 = vadd.f32 %v1246, %v1271
    %v1273 = vpop.f32.mrf.mxu0
    %1274 = vdwg.mxu0
    %vm1275 = vcmp.gt.f32.partialorder %v1272, 0.0
    %v1276 = vmul.f32 %v1272, 0.01
    %v1277 = vsel %vm1275, %v1272, %v1276
    %v1278 = vpack.c.bf16 %v1277, %v1277
    %v1279 = vld [vmem:[#allocation2 + $0x80] sm:$0xf]
    %v1280 = vld [vmem:[#allocation2 + $0x84] sm:$0xf]
    %v1281 = vld [vmem:[#allocation2 + $0x88] sm:$0xf]
    %v1282 = vld [vmem:[#allocation2 + $0x8c] sm:$0xf]
    %v1283 = vld [vmem:[#allocation2 + $0x94] sm:$0x1]
    %v1284 = vunpack.c.l.bf16 %v1283
    %v1285 = vperm.slane %v1284, 0
    %v1290 = vunpack.c.l.b16 %v1279
    %v1291 = vunpack.c.l.b16 %v1280
    %v1292 = vunpack.c.l.b16 %v1281
    %v1293 = vunpack.c.l.b16 %v1282
    %v1294 = vpack.c.b16 %v1291, %v1290
    %v1295 = vpack.c.b16 %v1293, %v1292
    %v1299 = vsel %vm121, %v1278, 0
    %1301 = vmatpush.bf16.msra.mxu0 0
    %1302 = vmatpush.bf16.msra.mxu0 0
    %1303 = vmatpush.bf16.msra.mxu0 0
    %1304 = vmatpush.bf16.msra.mxu0 0
    %1305 = vmatpush.bf16.msra.mxu0 0
    %1306 = vmatpush.bf16.msra.mxu0 0
    %1307 = vmatpush.bf16.msra.mxu0 %v1295
    %1308 = vmatpush.bf16.msra.mxu0 %v1294
    %1309 = vmatmul.bf16.gmra.mxu0 %v1299
    %v1310 = vpop.f32.mrf.mxu0
    %v1311 = vadd.f32 %v1285, %v1310
    %v1312 = vpop.f32.mrf.mxu0
    %1313 = vdwg.mxu0
    %vm1314 = vcmask 31744
    %1315 = vst.msk [vmem:[%s3] sm:$0xff] %vm1314, %v1311
    // Predicated region
    $region18: #{grunet_forward.1} parent=1 // pred_check
      _
    $region19: #{grunet_forward.1} parent=1 // pred_check_branch
      %1317 = sbr.rel (0) target = $region21
    $region20: #{grunet_forward.1} parent=1 // pred_region
      _
    $region21: #{grunet_forward.1} parent=1 // pred_fallthru
      _
    // Predicated region
    $region22: #{grunet_forward.1} parent=1 // pred_check
      _
    $region23: #{grunet_forward.1} parent=1 // pred_check_branch
      %1319 = sbr.rel (0) target = $region25
    $region24: #{grunet_forward.1} parent=1 // pred_region
      _
    $region25: #{grunet_forward.1} parent=1 // pred_fallthru
      _
    %1320 = vsyncpa [#allocation3], 1

</llo_original>
